<compile_context>
chip_gen: v7x
topology: tpu7x:2x2x1
jax: 0.10.0
libtpu: 0.0.40
codegen_flags: <defaults>
</compile_context>

<pallas_src>
import math

import jax
import jax.numpy as jnp
from jax import lax
from jax.experimental import pallas as pl
from jax.experimental.pallas import tpu as pltpu


def _fused_axial_attention_kernel(
        x_ref,        # (1, T, S*D)   bf16  one batch element, lane-dense
        gg_ref,       # (M, T)        bf16  row gather: row m <- x2d[m // S]
        colmask_ref,  # (M, S*D)      bf16  keep column block s == m % S
        wrep_ref,     # (S*D, 6*Dh)   bf16  vstack_S([q_t|q_s|k_t|k_s|v_t|v_s])
        hmask_ref,    # (2H*M, 2*Dh)  bf16  per-(pass, head) feature-block select
        bias_ref,     # (M, 2H*M)     f32   axial validity bias (0 / -1e30)
        seg_ref,      # (2H*M, 2H)    f32   segment-sum matrix (softmax denom)
        expand_ref,   # (2H, 2*Dh)    f32   per-segment scalar -> feature cols
        worep_ref,    # (2*Dh, S*D)   bf16  hstack_S([Wo_t; Wo_s])
        gs_ref,       # (T, M)        f32   row scatter back to (T, S*D)
        borep_ref,    # (1, S*D)      f32   tile_S(bo_t + bo_s)
        o_ref):       # (1, T, S*D)
    dh2 = worep_ref.shape[0]        # 2 * heads * dim_heads
    n_seg = seg_ref.shape[1]        # 2 * heads  (pass, head) segments

    x2d = x_ref[0]                                                    # (T, S*D) bf16

    # ---- (T, S*D) -> per-position rows, folded into the projection matmul ----
    # x_sel[m, s*D:(s+1)*D] = x[t_m, s_m*D:(s_m+1)*D] iff s == s_m else 0
    x_rows = jnp.dot(gg_ref[...], x2d, preferred_element_type=jnp.float32)
    x_sel = x_rows.astype(jnp.bfloat16) * colmask_ref[...]            # (M, S*D) bf16
    qkv = jnp.dot(x_sel, wrep_ref[...],
                  preferred_element_type=jnp.float32)                 # (M, 6*Dh) f32

    q = qkv[:, :dh2].astype(jnp.bfloat16)                             # [q_t | q_s]
    k = qkv[:, dh2:2 * dh2].astype(jnp.bfloat16)                      # [k_t | k_s]
    v = qkv[:, 2 * dh2:3 * dh2].astype(jnp.bfloat16)                  # [v_t | v_s]

    # ---- replicate K/V per (pass, head) segment (bf16) and mask features -----
    hmask = hmask_ref[...]
    k2 = jnp.concatenate([k] * n_seg, axis=0) * hmask                 # (2H*M, 2Dh)
    v2 = jnp.concatenate([v] * n_seg, axis=0) * hmask                 # (2H*M, 2Dh)

    # ---- scores for both passes & all heads in one slab (contraction 2*Dh) ---
    scores = lax.dot_general(q, k2, (((1,), (1,)), ((), ())),
                             preferred_element_type=jnp.float32)      # (M, 2H*M)
    scores = scores + bias_ref[...]
    scores = scores - jnp.max(scores, axis=-1, keepdims=True)
    p = jnp.exp(scores)                                               # masked -> 0

    # segmented softmax denominator; clamp guards den -> 0 (no Inf/NaN)
    den = jnp.dot(p, seg_ref[...], preferred_element_type=jnp.float32)    # (M, 2H)
    inv = pl.reciprocal(jnp.maximum(den, 1e-30), approx=True)             # EUP slot
    inv_full = jnp.dot(inv, expand_ref[...],
                       preferred_element_type=jnp.float32)                # (M, 2Dh)

    o_un = jnp.dot(p.astype(jnp.bfloat16), v2,
                   preferred_element_type=jnp.float32)                    # (M, 2Dh)
    o_n = (o_un * inv_full).astype(jnp.bfloat16)                          # [out_t|out_s]

    # ---- fused output projection of BOTH passes + axial sum, scattered back --
    # to the lane-dense (T, S*D) layout so the store is a full-width vst.
    out_rep = jnp.dot(o_n, worep_ref[...],
                      preferred_element_type=jnp.float32)                 # (M, S*D)
    out_rep = out_rep * colmask_ref[...]                                  # keep block s_m
    out2d = jnp.dot(gs_ref[...], out_rep,
                    preferred_element_type=jnp.float32)                   # (T, S*D)
    o_ref[0] = (out2d + borep_ref[...]).astype(o_ref.dtype)


def axial_attention_forward(key_tensor, shape, params_t, params_s, heads):
    """Forward pass equivalent to the PyTorch wrapper.

    key_tensor: (B, T, S*D); shape = (S, D) with D == dim (dim_index=-1).
    Returns (B, T, S*D).
    """
    b, t, orig = key_tensor.shape
    s, d = shape
    assert orig == s * d
    dh = params_t[0].shape[1]            # heads * dim_heads
    e = dh // heads
    scale = e ** -0.5
    m = t * s                            # positions per batch element (row m = t*S + s)
    n_seg = 2 * heads                    # (pass, head) segments
    hm2 = n_seg * m

    wq_t, wkv_t, wo_t, bo_t = params_t
    wq_s, wkv_s, wo_s, bo_s = params_s

    # Fused projection weights [q_t|q_s|k_t|k_s|v_t|v_s] with the softmax scale
    # folded into the q columns, replicated S times along rows so the logical
    # (T, S*D) -> (M, D) reshape is folded into the matmul.
    wqkv = jnp.concatenate([wq_t * scale, wq_s * scale,
                            wkv_t[:, :dh], wkv_s[:, :dh],
                            wkv_t[:, dh:], wkv_s[:, dh:]], axis=1)        # (D, 6Dh)
    w_rep = jnp.tile(wqkv, (s, 1)).astype(jnp.bfloat16)                   # (S*D, 6Dh)

    # Fused output projection of BOTH passes (also performs the axial sum),
    # column-replicated S times for the lane-dense scatter-back matmul.
    wo_stack = jnp.concatenate([wo_t, wo_s], axis=0)                      # (2Dh, D)
    wo_rep = jnp.tile(wo_stack, (1, s)).astype(jnp.bfloat16)              # (2Dh, S*D)
    bo_rep = jnp.tile((bo_t + bo_s).reshape(1, d), (1, s)).astype(jnp.float32)

    # ---- resident constant structure matrices (hoisted out of the kernel) ----
    rows_m = jnp.arange(m)
    t_i, s_i = rows_m // s, rows_m % s
    gg = (rows_m[:, None] // s == jnp.arange(t)[None, :]).astype(jnp.bfloat16)   # (M,T)
    gs = (jnp.arange(t)[:, None] == rows_m[None, :] // s).astype(jnp.float32)    # (T,M)
    colmask = ((jnp.arange(s * d) // d)[None, :] ==
               s_i[:, None]).astype(jnp.bfloat16)                                # (M,S*D)

    seg_of_row = jnp.arange(hm2) // m                    # segment g = pass*H + head
    feat_seg = jnp.arange(2 * dh) // e                   # segment of feature column
    hmask = (seg_of_row[:, None] == feat_seg[None, :]).astype(jnp.bfloat16)      # (2HM,2Dh)
    seg = (seg_of_row[:, None] ==
           jnp.arange(n_seg)[None, :]).astype(jnp.float32)                       # (2HM,2H)
    expand = (jnp.arange(n_seg)[:, None] == feat_seg[None, :]).astype(jnp.float32)

    # additive axial validity bias: pass T attends over same s, pass S over same t
    pass_of_col = jnp.arange(hm2) // (heads * m)
    j_of_col = jnp.arange(hm2) % m
    t_j, s_j = j_of_col // s, j_of_col % s
    valid = jnp.where(pass_of_col[None, :] == 0,
                      s_i[:, None] == s_j[None, :],
                      t_i[:, None] == t_j[None, :])
    bias = jnp.where(valid, 0.0, -1e30).astype(jnp.float32)                      # (M,2HM)

    x_bf = key_tensor.astype(jnp.bfloat16)               # (B, T, S*D) lane-dense bf16

    res = lambda shp: pl.BlockSpec(shp, lambda i: (0, 0))   # resident constant block

    out = pl.pallas_call(
        _fused_axial_attention_kernel,
        out_shape=jax.ShapeDtypeStruct((b, t, s * d), key_tensor.dtype),
        grid=(b,),
        in_specs=[
            pl.BlockSpec((1, t, s * d), lambda i: (i, 0, 0)),   # x: one batch element
            res((m, t)),                 # gg
            res((m, s * d)),             # colmask
            res((s * d, 6 * dh)),        # w_rep
            res((hm2, 2 * dh)),          # hmask
            res((m, hm2)),               # bias
            res((hm2, n_seg)),           # seg
            res((n_seg, 2 * dh)),        # expand
            res((2 * dh, s * d)),        # wo_rep
            res((t, m)),                 # gs
            res((1, s * d)),             # bo_rep
        ],
        out_specs=pl.BlockSpec((1, t, s * d), lambda i: (i, 0, 0)),
        compiler_params=pltpu.CompilerParams(
            dimension_semantics=("parallel",),      # B=2 -> one step per TC on v7x
            vmem_limit_bytes=32 * 1024 * 1024),     # explicit budget (safe on v5e/v6e/v7x)
    )(x_bf, gg, colmask, w_rep, hmask, bias, seg, expand, wo_rep, gs, bo_rep)
    return out


def init_self_attention_params(key, dim, heads, dim_heads=None):
    """Deterministic synthetic params matching lucidrains SelfAttention shapes."""
    dim_heads = (dim // heads) if dim_heads is None else dim_heads
    dim_hidden = dim_heads * heads
    k1, k2, k3, k4 = jax.random.split(key, 4)
    s_in = 1.0 / math.sqrt(dim)
    s_out = 1.0 / math.sqrt(dim_hidden)
    wq = jax.random.uniform(k1, (dim, dim_hidden), jnp.float32, -s_in, s_in)
    wkv = jax.random.uniform(k2, (dim, 2 * dim_hidden), jnp.float32, -s_in, s_in)
    wo = jax.random.uniform(k3, (dim_hidden, dim), jnp.float32, -s_out, s_out)
    bo = jax.random.uniform(k4, (dim,), jnp.float32, -s_out, s_out)
    return wq, wkv, wo, bo


# ---------------- pure-JAX reference (mirrors the PyTorch math) ----------------

def _ref_self_attention(x, wq, wkv, wo, bo, heads):
    n, l, d = x.shape
    dh = wq.shape[1]
    e = dh // heads
    q = x @ wq
    kv = x @ wkv
    k, v = kv[..., :dh], kv[..., dh:]
    mh = lambda a: a.reshape(n, l, heads, e).transpose(0, 2, 1, 3)
    qh, kh, vh = mh(q), mh(k), mh(v)
    dots = jnp.einsum('nhie,nhje->nhij', qh, kh) * (e ** -0.5)
    p = jax.nn.softmax(dots, axis=-1)
    out = jnp.einsum('nhij,nhje->nhie', p, vh)
    out = out.transpose(0, 2, 1, 3).reshape(n, l, dh)
    return out @ wo + bo


def ref_forward(key_tensor, shape, params_t, params_s, heads):
    b, t, orig = key_tensor.shape
    s, d = shape
    x = key_tensor.reshape(b, t, s, d)
    xt = jnp.transpose(x, (0, 2, 1, 3)).reshape(b * s, t, d)
    ot = _ref_self_attention(xt, *params_t, heads)
    ot = jnp.transpose(ot.reshape(b, s, t, d), (0, 2, 1, 3))
    xs = x.reshape(b * t, s, d)
    os_ = _ref_self_attention(xs, *params_s, heads).reshape(b, t, s, d)
    return (ot + os_).reshape(b, t, s * d)


if __name__ == "__main__":
    # module config: dim=32, shape=(4, 32), heads=8 -> dim_heads=4
    B, T = 2, 8
    S, D = 4, 32
    HEADS = 8
    SHAPE = (S, D)

    root = jax.random.PRNGKey(0)
    kx, kp1, kp2 = jax.random.split(root, 3)

    # key tensor (#batch, time2, original_size); query/value/mask are ignored.
    key_in = jax.random.normal(kx, (B, T, S * D), jnp.float32)

    params_t = init_self_attention_params(kp1, D, HEADS)   # attention along T
    params_s = init_self_attention_params(kp2, D, HEADS)   # attention along S

    fwd = jax.jit(axial_attention_forward, static_argnums=(1, 4))
    out = jax.block_until_ready(fwd(key_in, SHAPE, params_t, params_s, HEADS))

    ref = jax.block_until_ready(ref_forward(key_in, SHAPE, params_t, params_s, HEADS))
    assert out.shape == (B, T, S * D)
    max_err = float(jnp.max(jnp.abs(out - ref)))
    # bf16 matmul inputs with f32 accumulation vs f32 reference
    assert jnp.allclose(out, ref, atol=3e-2, rtol=3e-2), \
        f"mismatch vs reference (max abs err {max_err:.4e})"

    print("KERNEL_OK")
</pallas_src>

<mosaic_0001>
module attributes {stable_mosaic.version = 11 : i64} {
  func.func @_fused_axial_attention_kernel(%arg0: i32, %arg1: memref<1x8x128xbf16, #tpu.memory_space<vmem>>, %arg2: memref<32x8xbf16, #tpu.memory_space<vmem>>, %arg3: memref<32x128xbf16, #tpu.memory_space<vmem>>, %arg4: memref<128x192xbf16, #tpu.memory_space<vmem>>, %arg5: memref<512x64xbf16, #tpu.memory_space<vmem>>, %arg6: memref<32x512xf32, #tpu.memory_space<vmem>>, %arg7: memref<512x16xf32, #tpu.memory_space<vmem>>, %arg8: memref<16x64xf32, #tpu.memory_space<vmem>>, %arg9: memref<64x128xbf16, #tpu.memory_space<vmem>>, %arg10: memref<8x32xf32, #tpu.memory_space<vmem>>, %arg11: memref<1x128xf32, #tpu.memory_space<vmem>>, %arg12: memref<1x8x128xf32, #tpu.memory_space<vmem>>) attributes {dimension_semantics = [#tpu.dimension_semantics<parallel>], iteration_bounds = array<i64: 2>, scalar_prefetch = 0 : i64, scratch_operands = 0 : i64, tpu.core_type = #tpu.core_type<tc>, window_params = [{transform_indices = @transform_0, window_bounds = array<i64: 1, 8, 128>}, {pipeline_mode = #tpu.pipeline_mode<synchronous>, transform_indices = @transform_1, window_bounds = array<i64: 32, 8>}, {pipeline_mode = #tpu.pipeline_mode<synchronous>, transform_indices = @transform_2, window_bounds = array<i64: 32, 128>}, {pipeline_mode = #tpu.pipeline_mode<synchronous>, transform_indices = @transform_3, window_bounds = array<i64: 128, 192>}, {pipeline_mode = #tpu.pipeline_mode<synchronous>, transform_indices = @transform_4, window_bounds = array<i64: 512, 64>}, {pipeline_mode = #tpu.pipeline_mode<synchronous>, transform_indices = @transform_5, window_bounds = array<i64: 32, 512>}, {pipeline_mode = #tpu.pipeline_mode<synchronous>, transform_indices = @transform_6, window_bounds = array<i64: 512, 16>}, {pipeline_mode = #tpu.pipeline_mode<synchronous>, transform_indices = @transform_7, window_bounds = array<i64: 16, 64>}, {pipeline_mode = #tpu.pipeline_mode<synchronous>, transform_indices = @transform_8, window_bounds = array<i64: 64, 128>}, {pipeline_mode = #tpu.pipeline_mode<synchronous>, transform_indices = @transform_9, window_bounds = array<i64: 8, 32>}, {pipeline_mode = #tpu.pipeline_mode<synchronous>, transform_indices = @transform_10, window_bounds = array<i64: 1, 128>}, {transform_indices = @transform_11, window_bounds = array<i64: 1, 8, 128>}]} {
    %c0 = arith.constant 0 : index
    %c0_0 = arith.constant 0 : index
    %c0_1 = arith.constant 0 : index
    %0 = vector.load %arg1[%c0, %c0_0, %c0_1] : memref<1x8x128xbf16, #tpu.memory_space<vmem>>, vector<1x8x128xbf16>
    %1 = vector.shape_cast %0 : vector<1x8x128xbf16> to vector<8x128xbf16>
    %c0_2 = arith.constant 0 : index
    %c0_3 = arith.constant 0 : index
    %2 = vector.load %arg2[%c0_2, %c0_3] : memref<32x8xbf16, #tpu.memory_space<vmem>>, vector<32x8xbf16>
    %cst = arith.constant dense<0.000000e+00> : vector<32x128xf32>
    %3 = tpu.matmul %2, %1, %cst {dimension_numbers = #tpu.dot_dimension_numbers<[1], [0], [0], [1], [0, 0, 1, 1], [], []>} : vector<32x8xbf16>, vector<8x128xbf16>, vector<32x128xf32> -> vector<32x128xf32>
    %4 = arith.truncf %3 : vector<32x128xf32> to vector<32x128xbf16>
    %c0_4 = arith.constant 0 : index
    %c0_5 = arith.constant 0 : index
    %5 = vector.load %arg3[%c0_4, %c0_5] : memref<32x128xbf16, #tpu.memory_space<vmem>>, vector<32x128xbf16>
    %6 = arith.mulf %4, %5 : vector<32x128xbf16>
    %c0_6 = arith.constant 0 : index
    %c0_7 = arith.constant 0 : index
    %7 = vector.load %arg4[%c0_6, %c0_7] : memref<128x192xbf16, #tpu.memory_space<vmem>>, vector<128x192xbf16>
    %cst_8 = arith.constant dense<0.000000e+00> : vector<32x192xf32>
    %8 = tpu.matmul %6, %7, %cst_8 {dimension_numbers = #tpu.dot_dimension_numbers<[1], [0], [0], [1], [0, 0, 1, 1], [], []>} : vector<32x128xbf16>, vector<128x192xbf16>, vector<32x192xf32> -> vector<32x192xf32>
    %9 = vector.extract_strided_slice %8 {offsets = [0, 0], sizes = [32, 64], strides = [1, 1]} : vector<32x192xf32> to vector<32x64xf32>
    %10 = arith.truncf %9 : vector<32x64xf32> to vector<32x64xbf16>
    %11 = vector.extract_strided_slice %8 {offsets = [0, 64], sizes = [32, 64], strides = [1, 1]} : vector<32x192xf32> to vector<32x64xf32>
    %12 = arith.truncf %11 : vector<32x64xf32> to vector<32x64xbf16>
    %13 = vector.extract_strided_slice %8 {offsets = [0, 128], sizes = [32, 64], strides = [1, 1]} : vector<32x192xf32> to vector<32x64xf32>
    %14 = arith.truncf %13 : vector<32x64xf32> to vector<32x64xbf16>
    %c0_9 = arith.constant 0 : index
    %c0_10 = arith.constant 0 : index
    %15 = vector.load %arg5[%c0_9, %c0_10] : memref<512x64xbf16, #tpu.memory_space<vmem>>, vector<512x64xbf16>
    %16 = tpu.concatenate %12, %12, %12, %12, %12, %12, %12, %12, %12, %12, %12, %12, %12, %12, %12, %12 in 0 : vector<32x64xbf16>, vector<32x64xbf16>, vector<32x64xbf16>, vector<32x64xbf16>, vector<32x64xbf16>, vector<32x64xbf16>, vector<32x64xbf16>, vector<32x64xbf16>, vector<32x64xbf16>, vector<32x64xbf16>, vector<32x64xbf16>, vector<32x64xbf16>, vector<32x64xbf16>, vector<32x64xbf16>, vector<32x64xbf16>, vector<32x64xbf16> -> vector<512x64xbf16>
    %17 = arith.mulf %16, %15 : vector<512x64xbf16>
    %18 = tpu.concatenate %14, %14, %14, %14, %14, %14, %14, %14, %14, %14, %14, %14, %14, %14, %14, %14 in 0 : vector<32x64xbf16>, vector<32x64xbf16>, vector<32x64xbf16>, vector<32x64xbf16>, vector<32x64xbf16>, vector<32x64xbf16>, vector<32x64xbf16>, vector<32x64xbf16>, vector<32x64xbf16>, vector<32x64xbf16>, vector<32x64xbf16>, vector<32x64xbf16>, vector<32x64xbf16>, vector<32x64xbf16>, vector<32x64xbf16>, vector<32x64xbf16> -> vector<512x64xbf16>
    %19 = arith.mulf %18, %15 : vector<512x64xbf16>
    %cst_11 = arith.constant dense<0.000000e+00> : vector<32x512xf32>
    %20 = tpu.matmul %10, %17, %cst_11 {dimension_numbers = #tpu.dot_dimension_numbers<[1], [1], [0], [0], [0, 0, 1, 0], [], []>} : vector<32x64xbf16>, vector<512x64xbf16>, vector<32x512xf32> -> vector<32x512xf32>
    %c0_12 = arith.constant 0 : index
    %c0_13 = arith.constant 0 : index
    %21 = vector.load %arg6[%c0_12, %c0_13] : memref<32x512xf32, #tpu.memory_space<vmem>>, vector<32x512xf32>
    %22 = arith.addf %20, %21 : vector<32x512xf32>
    %cst_14 = arith.constant dense<0xFF800000> : vector<32xf32>
    %23 = vector.multi_reduction <maximumf>, %22, %cst_14 [1] : vector<32x512xf32> to vector<32xf32>
    %24 = vector.shape_cast %23 : vector<32xf32> to vector<32x1xf32>
    %25 = vector.broadcast %24 : vector<32x1xf32> to vector<32x512xf32>
    %26 = arith.subf %22, %25 : vector<32x512xf32>
    %27 = math.exp %26 : vector<32x512xf32>
    %c0_15 = arith.constant 0 : index
    %c0_16 = arith.constant 0 : index
    %28 = vector.load %arg7[%c0_15, %c0_16] : memref<512x16xf32, #tpu.memory_space<vmem>>, vector<512x16xf32>
    %cst_17 = arith.constant dense<0.000000e+00> : vector<32x16xf32>
    %29 = tpu.matmul %27, %28, %cst_17 {dimension_numbers = #tpu.dot_dimension_numbers<[1], [0], [0], [1], [0, 0, 1, 1], [], []>} : vector<32x512xf32>, vector<512x16xf32>, vector<32x16xf32> -> vector<32x16xf32>
    %cst_18 = arith.constant 1.000000e-30 : f32
    %30 = vector.broadcast %cst_18 : f32 to vector<32x16xf32>
    %31 = arith.maximumf %29, %30 : vector<32x16xf32>
    %32 = tpu.reciprocal %31 {approx = true} : vector<32x16xf32> -> vector<32x16xf32>
    %c0_19 = arith.constant 0 : index
    %c0_20 = arith.constant 0 : index
    %33 = vector.load %arg8[%c0_19, %c0_20] : memref<16x64xf32, #tpu.memory_space<vmem>>, vector<16x64xf32>
    %cst_21 = arith.constant dense<0.000000e+00> : vector<32x64xf32>
    %34 = tpu.matmul %32, %33, %cst_21 {dimension_numbers = #tpu.dot_dimension_numbers<[1], [0], [0], [1], [0, 0, 1, 1], [], []>} : vector<32x16xf32>, vector<16x64xf32>, vector<32x64xf32> -> vector<32x64xf32>
    %35 = arith.truncf %27 : vector<32x512xf32> to vector<32x512xbf16>
    %cst_22 = arith.constant dense<0.000000e+00> : vector<32x64xf32>
    %36 = tpu.matmul %35, %19, %cst_22 {dimension_numbers = #tpu.dot_dimension_numbers<[1], [0], [0], [1], [0, 0, 1, 1], [], []>} : vector<32x512xbf16>, vector<512x64xbf16>, vector<32x64xf32> -> vector<32x64xf32>
    %37 = arith.mulf %36, %34 : vector<32x64xf32>
    %38 = arith.truncf %37 : vector<32x64xf32> to vector<32x64xbf16>
    %c0_23 = arith.constant 0 : index
    %c0_24 = arith.constant 0 : index
    %39 = vector.load %arg9[%c0_23, %c0_24] : memref<64x128xbf16, #tpu.memory_space<vmem>>, vector<64x128xbf16>
    %cst_25 = arith.constant dense<0.000000e+00> : vector<32x128xf32>
    %40 = tpu.matmul %38, %39, %cst_25 {dimension_numbers = #tpu.dot_dimension_numbers<[1], [0], [0], [1], [0, 0, 1, 1], [], []>} : vector<32x64xbf16>, vector<64x128xbf16>, vector<32x128xf32> -> vector<32x128xf32>
    %c0_26 = arith.constant 0 : index
    %c0_27 = arith.constant 0 : index
    %41 = vector.load %arg3[%c0_26, %c0_27] : memref<32x128xbf16, #tpu.memory_space<vmem>>, vector<32x128xbf16>
    %42 = arith.extf %41 : vector<32x128xbf16> to vector<32x128xf32>
    %43 = arith.mulf %40, %42 : vector<32x128xf32>
    %c0_28 = arith.constant 0 : index
    %c0_29 = arith.constant 0 : index
    %44 = vector.load %arg10[%c0_28, %c0_29] : memref<8x32xf32, #tpu.memory_space<vmem>>, vector<8x32xf32>
    %cst_30 = arith.constant dense<0.000000e+00> : vector<8x128xf32>
    %45 = tpu.matmul %44, %43, %cst_30 {dimension_numbers = #tpu.dot_dimension_numbers<[1], [0], [0], [1], [0, 0, 1, 1], [], []>} : vector<8x32xf32>, vector<32x128xf32>, vector<8x128xf32> -> vector<8x128xf32>
    %c0_31 = arith.constant 0 : index
    %c0_32 = arith.constant 0 : index
    %46 = vector.load %arg11[%c0_31, %c0_32] : memref<1x128xf32, #tpu.memory_space<vmem>>, vector<1x128xf32>
    %47 = vector.broadcast %46 : vector<1x128xf32> to vector<8x128xf32>
    %48 = arith.addf %45, %47 : vector<8x128xf32>
    %c0_33 = arith.constant 0 : index
    %c0_34 = arith.constant 0 : index
    %c0_35 = arith.constant 0 : index
    %49 = vector.load %arg12[%c0_33, %c0_34, %c0_35] : memref<1x8x128xf32, #tpu.memory_space<vmem>>, vector<1x8x128xf32>
    %50 = vector.shape_cast %49 : vector<1x8x128xf32> to vector<8x128xf32>
    %51 = vector.shape_cast %48 : vector<8x128xf32> to vector<1x8x128xf32>
    tpu.vector_store %arg12[%c0_33, %c0_34, %c0_35], %51 {strides = array<i32>} : memref<1x8x128xf32, #tpu.memory_space<vmem>>, vector<1x8x128xf32>,
    return
  }
  func.func @transform_0(%arg0: i32) -> (i32, i32, i32) {
    %c0_i32 = arith.constant 0 : i32
    %c0_i32_0 = arith.constant 0 : i32
    %c0_i32_1 = arith.constant 0 : i32
    return %arg0, %c0_i32, %c0_i32_0 : i32, i32, i32
  }
  func.func @transform_1(%arg0: i32) -> (i32, i32) {
    %c0_i32 = arith.constant 0 : i32
    %c0_i32_0 = arith.constant 0 : i32
    %c0_i32_1 = arith.constant 0 : i32
    return %c0_i32, %c0_i32_0 : i32, i32
  }
  func.func @transform_2(%arg0: i32) -> (i32, i32) {
    %c0_i32 = arith.constant 0 : i32
    %c0_i32_0 = arith.constant 0 : i32
    %c0_i32_1 = arith.constant 0 : i32
    return %c0_i32, %c0_i32_0 : i32, i32
  }
  func.func @transform_3(%arg0: i32) -> (i32, i32) {
    %c0_i32 = arith.constant 0 : i32
    %c0_i32_0 = arith.constant 0 : i32
    %c0_i32_1 = arith.constant 0 : i32
    return %c0_i32, %c0_i32_0 : i32, i32
  }
  func.func @transform_4(%arg0: i32) -> (i32, i32) {
    %c0_i32 = arith.constant 0 : i32
    %c0_i32_0 = arith.constant 0 : i32
    %c0_i32_1 = arith.constant 0 : i32
    return %c0_i32, %c0_i32_0 : i32, i32
  }
  func.func @transform_5(%arg0: i32) -> (i32, i32) {
    %c0_i32 = arith.constant 0 : i32
    %c0_i32_0 = arith.constant 0 : i32
    %c0_i32_1 = arith.constant 0 : i32
    return %c0_i32, %c0_i32_0 : i32, i32
  }
  func.func @transform_6(%arg0: i32) -> (i32, i32) {
    %c0_i32 = arith.constant 0 : i32
    %c0_i32_0 = arith.constant 0 : i32
    %c0_i32_1 = arith.constant 0 : i32
    return %c0_i32, %c0_i32_0 : i32, i32
  }
  func.func @transform_7(%arg0: i32) -> (i32, i32) {
    %c0_i32 = arith.constant 0 : i32
    %c0_i32_0 = arith.constant 0 : i32
    %c0_i32_1 = arith.constant 0 : i32
    return %c0_i32, %c0_i32_0 : i32, i32
  }
  func.func @transform_8(%arg0: i32) -> (i32, i32) {
    %c0_i32 = arith.constant 0 : i32
    %c0_i32_0 = arith.constant 0 : i32
    %c0_i32_1 = arith.constant 0 : i32
    return %c0_i32, %c0_i32_0 : i32, i32
  }
  func.func @transform_9(%arg0: i32) -> (i32, i32) {
    %c0_i32 = arith.constant 0 : i32
    %c0_i32_0 = arith.constant 0 : i32
    %c0_i32_1 = arith.constant 0 : i32
    return %c0_i32, %c0_i32_0 : i32, i32
  }
  func.func @transform_10(%arg0: i32) -> (i32, i32) {
    %c0_i32 = arith.constant 0 : i32
    %c0_i32_0 = arith.constant 0 : i32
    %c0_i32_1 = arith.constant 0 : i32
    return %c0_i32, %c0_i32_0 : i32, i32
  }
  func.func @transform_11(%arg0: i32) -> (i32, i32, i32) {
    %c0_i32 = arith.constant 0 : i32
    %c0_i32_0 = arith.constant 0 : i32
    %c0_i32_1 = arith.constant 0 : i32
    return %arg0, %c0_i32, %c0_i32_0 : i32, i32, i32
  }
}

</mosaic_0001>

<llo_original>
// kernel: axial_attention_forward.1
$region0: #{axial_attention_forward.1}
  #allocation0 [shape = 'u32[]', space=smem, size = 0x4, offset = 0x4, fixed_abs, tag = 'smem constant byte address 0x4 - core index']
  #allocation1 [shape = 'u32[144,128]{1,0:T(1,128)}', space=vmem, size = 0x12000, scoped, tag = 'internal scratch']
  %s0 = inlined_call_operand.vmem [shape: bf16[2,8,128], index: 0, kind: input, shape index: {}]
  %s1 = inlined_call_operand.vmem [shape: bf16[32,8], index: 1, kind: input, shape index: {}]
  %s2 = inlined_call_operand.vmem [shape: bf16[32,128], index: 2, kind: input, shape index: {}]
  %s3 = inlined_call_operand.vmem [shape: bf16[128,192], index: 3, kind: input, shape index: {}]
  %s4 = inlined_call_operand.vmem [shape: bf16[512,64], index: 4, kind: input, shape index: {}]
  %s5 = inlined_call_operand.vmem [shape: f32[32,512], index: 5, kind: input, shape index: {}]
  %s6 = inlined_call_operand.vmem [shape: f32[512,16], index: 6, kind: input, shape index: {}]
  %s7 = inlined_call_operand.vmem [shape: f32[16,64], index: 7, kind: input, shape index: {}]
  %s8 = inlined_call_operand.vmem [shape: bf16[64,128], index: 8, kind: input, shape index: {}]
  %s9 = inlined_call_operand.vmem [shape: f32[8,32], index: 9, kind: input, shape index: {}]
  %s10 = inlined_call_operand.vmem [shape: f32[1,128], index: 10, kind: input, shape index: {}]
  %s11 = inlined_call_operand.hbm [shape: f32[2,8,128], index: 11, kind: output, shape index: {}]
  %s12 = sld [smem:[#allocation0]]
  $region77: #{axial_attention_forward.1} parent=0
    _
  %s14 = ssub.s32 1, %s12
  %s15 = scalar_select 0, %s14, %s12
  $region1: #{axial_attention_forward.1} parent=0
    #allocation2 [shape = 'u8[8192]{0}', space=vmem, size = 0x2000, scoped, tag = 'output window, operand 0']
    #allocation3 [shape = 's32[2]{0}', space=sflag, size = 0x8, scoped, tag = 'scoped memory for axial_attention_forward.1']
    %16 = vsyncpa [#allocation3], 0
    %s17 = scalar_lea.sflag [#allocation3], 1
    %18 = vsyncpa %s17, 0
    loop: start=0, step=1, limit=4
    $region2: #{axial_attention_forward.1} parent=1 // loop_pre_header
      _
    $region3: #{axial_attention_forward.1} parent=1 // loop_header
      %s20 = sphi 0, %s24
      %p21 = scmp.ge.s32.totalorder %s20, 4
      %s30 = sphi 0, %s32
      %s33 = sphi 0, %s30
      %s34 = sphi 0, %s33
      %s50 = sphi 0, %s34
      %s54 = sphi 0, %s54
      %s56 = sphi 0, %s54
      %s57 = sphi 0, %s56
      %s71 = sphi 0, %s57
      %s75 = sphi 0, %s75
      %s77 = sphi 0, %s75
      %s78 = sphi 0, %s77
      %s92 = sphi 0, %s78
      %s96 = sphi 0, %s96
      %s98 = sphi 0, %s96
      %s99 = sphi 0, %s98
      %s113 = sphi 0, %s99
      %s117 = sphi 0, %s117
      %s119 = sphi 0, %s117
      %s120 = sphi 0, %s119
      %s134 = sphi 0, %s120
      %s138 = sphi 0, %s138
      %s140 = sphi 0, %s138
      %s141 = sphi 0, %s140
      %s155 = sphi 0, %s141
      %s159 = sphi 0, %s159
      %s161 = sphi 0, %s159
      %s162 = sphi 0, %s161
      %s176 = sphi 0, %s162
      %s180 = sphi 0, %s180
      %s182 = sphi 0, %s180
      %s183 = sphi 0, %s182
      %s197 = sphi 0, %s183
      %s201 = sphi 0, %s201
      %s203 = sphi 0, %s201
      %s204 = sphi 0, %s203
      %s218 = sphi 0, %s204
      %s222 = sphi 0, %s222
      %s224 = sphi 0, %s222
      %s225 = sphi 0, %s224
      %s239 = sphi 0, %s225
      %s243 = sphi 0, %s243
      %s245 = sphi 0, %s243
      %s246 = sphi 0, %s245
      %s260 = sphi 0, %s246
      %s266 = sphi 0, %s268
      %s269 = sphi 0, %s266
      %s270 = sphi 0, %s269
      %s286 = sphi 0, %s270
    $region4: #{axial_attention_forward.1} parent=1 // loop_header_branch
      %23 = sbr.rel (%p21) target = $region8
    $region5: #{axial_attention_forward.1} parent=1 // loop_body
      %s25 = ssub.s32 %s20, 1
      %s26 = ssub.s32 %s20, 2
      %s27 = sadd.s32 %s20, 1
      %s28 = ssub.s32 %s20, %s27
      %p29 = scmp.eq.s32.totalorder %s28, 0
      %s31 = sadd.s32 %s30, 1
      %s32 = scalar_select %p29, %s30, %s31
      %p35 = pneg %p29
      %p36 = scmp.eq.s32.totalorder %s20, 1
      %p37 = por %p35, %p36
      %p38 = scmp.ne.s32.totalorder %s30, %s33
      %p39 = scmp.eq.s32.totalorder %s20, 0
      %p40 = por %p38, %p39
      %p41 = scmp.ne.s32.totalorder %s30, %s33
      %p42 = scmp.eq.s32.totalorder %s25, 1
      %p43 = por %p41, %p42
      %p44 = scmp.ne.s32.totalorder %s33, %s34
      %p45 = scmp.eq.s32.totalorder %s25, 0
      %p46 = por %p44, %p45
      %p47 = scmp.ne.s32.totalorder %s33, %s34
      %p48 = scmp.eq.s32.totalorder %s26, 1
      %p49 = por %p47, %p48
      %p51 = scmp.ne.s32.totalorder %s34, %s50
      %p52 = scmp.eq.s32.totalorder %s26, 0
      %p53 = por %p51, %p52
      %s55 = sadd.s32 %s54, 1
      %p58 = scmp.eq.s32.totalorder %s20, 1
      %p59 = scmp.ne.s32.totalorder %s54, %s56
      %p60 = scmp.eq.s32.totalorder %s20, 0
      %p61 = por %p59, %p60
      %p62 = scmp.ne.s32.totalorder %s54, %s56
      %p63 = scmp.eq.s32.totalorder %s25, 1
      %p64 = por %p62, %p63
      %p65 = scmp.ne.s32.totalorder %s56, %s57
      %p66 = scmp.eq.s32.totalorder %s25, 0
      %p67 = por %p65, %p66
      %p68 = scmp.ne.s32.totalorder %s56, %s57
      %p69 = scmp.eq.s32.totalorder %s26, 1
      %p70 = por %p68, %p69
      %p72 = scmp.ne.s32.totalorder %s57, %s71
      %p73 = scmp.eq.s32.totalorder %s26, 0
      %p74 = por %p72, %p73
      %s76 = sadd.s32 %s75, 1
      %p79 = scmp.eq.s32.totalorder %s20, 1
      %p80 = scmp.ne.s32.totalorder %s75, %s77
      %p81 = scmp.eq.s32.totalorder %s20, 0
      %p82 = por %p80, %p81
      %p83 = scmp.ne.s32.totalorder %s75, %s77
      %p84 = scmp.eq.s32.totalorder %s25, 1
      %p85 = por %p83, %p84
      %p86 = scmp.ne.s32.totalorder %s77, %s78
      %p87 = scmp.eq.s32.totalorder %s25, 0
      %p88 = por %p86, %p87
      %p89 = scmp.ne.s32.totalorder %s77, %s78
      %p90 = scmp.eq.s32.totalorder %s26, 1
      %p91 = por %p89, %p90
      %p93 = scmp.ne.s32.totalorder %s78, %s92
      %p94 = scmp.eq.s32.totalorder %s26, 0
      %p95 = por %p93, %p94
      %s97 = sadd.s32 %s96, 1
      %p100 = scmp.eq.s32.totalorder %s20, 1
      %p101 = scmp.ne.s32.totalorder %s96, %s98
      %p102 = scmp.eq.s32.totalorder %s20, 0
      %p103 = por %p101, %p102
      %p104 = scmp.ne.s32.totalorder %s96, %s98
      %p105 = scmp.eq.s32.totalorder %s25, 1
      %p106 = por %p104, %p105
      %p107 = scmp.ne.s32.totalorder %s98, %s99
      %p108 = scmp.eq.s32.totalorder %s25, 0
      %p109 = por %p107, %p108
      %p110 = scmp.ne.s32.totalorder %s98, %s99
      %p111 = scmp.eq.s32.totalorder %s26, 1
      %p112 = por %p110, %p111
      %p114 = scmp.ne.s32.totalorder %s99, %s113
      %p115 = scmp.eq.s32.totalorder %s26, 0
      %p116 = por %p114, %p115
      %s118 = sadd.s32 %s117, 1
      %p121 = scmp.eq.s32.totalorder %s20, 1
      %p122 = scmp.ne.s32.totalorder %s117, %s119
      %p123 = scmp.eq.s32.totalorder %s20, 0
      %p124 = por %p122, %p123
      %p125 = scmp.ne.s32.totalorder %s117, %s119
      %p126 = scmp.eq.s32.totalorder %s25, 1
      %p127 = por %p125, %p126
      %p128 = scmp.ne.s32.totalorder %s119, %s120
      %p129 = scmp.eq.s32.totalorder %s25, 0
      %p130 = por %p128, %p129
      %p131 = scmp.ne.s32.totalorder %s119, %s120
      %p132 = scmp.eq.s32.totalorder %s26, 1
      %p133 = por %p131, %p132
      %p135 = scmp.ne.s32.totalorder %s120, %s134
      %p136 = scmp.eq.s32.totalorder %s26, 0
      %p137 = por %p135, %p136
      %s139 = sadd.s32 %s138, 1
      %p142 = scmp.eq.s32.totalorder %s20, 1
      %p143 = scmp.ne.s32.totalorder %s138, %s140
      %p144 = scmp.eq.s32.totalorder %s20, 0
      %p145 = por %p143, %p144
      %p146 = scmp.ne.s32.totalorder %s138, %s140
      %p147 = scmp.eq.s32.totalorder %s25, 1
      %p148 = por %p146, %p147
      %p149 = scmp.ne.s32.totalorder %s140, %s141
      %p150 = scmp.eq.s32.totalorder %s25, 0
      %p151 = por %p149, %p150
      %p152 = scmp.ne.s32.totalorder %s140, %s141
      %p153 = scmp.eq.s32.totalorder %s26, 1
      %p154 = por %p152, %p153
      %p156 = scmp.ne.s32.totalorder %s141, %s155
      %p157 = scmp.eq.s32.totalorder %s26, 0
      %p158 = por %p156, %p157
      %s160 = sadd.s32 %s159, 1
      %p163 = scmp.eq.s32.totalorder %s20, 1
      %p164 = scmp.ne.s32.totalorder %s159, %s161
      %p165 = scmp.eq.s32.totalorder %s20, 0
      %p166 = por %p164, %p165
      %p167 = scmp.ne.s32.totalorder %s159, %s161
      %p168 = scmp.eq.s32.totalorder %s25, 1
      %p169 = por %p167, %p168
      %p170 = scmp.ne.s32.totalorder %s161, %s162
      %p171 = scmp.eq.s32.totalorder %s25, 0
      %p172 = por %p170, %p171
      %p173 = scmp.ne.s32.totalorder %s161, %s162
      %p174 = scmp.eq.s32.totalorder %s26, 1
      %p175 = por %p173, %p174
      %p177 = scmp.ne.s32.totalorder %s162, %s176
      %p178 = scmp.eq.s32.totalorder %s26, 0
      %p179 = por %p177, %p178
      %s181 = sadd.s32 %s180, 1
      %p184 = scmp.eq.s32.totalorder %s20, 1
      %p185 = scmp.ne.s32.totalorder %s180, %s182
      %p186 = scmp.eq.s32.totalorder %s20, 0
      %p187 = por %p185, %p186
      %p188 = scmp.ne.s32.totalorder %s180, %s182
      %p189 = scmp.eq.s32.totalorder %s25, 1
      %p190 = por %p188, %p189
      %p191 = scmp.ne.s32.totalorder %s182, %s183
      %p192 = scmp.eq.s32.totalorder %s25, 0
      %p193 = por %p191, %p192
      %p194 = scmp.ne.s32.totalorder %s182, %s183
      %p195 = scmp.eq.s32.totalorder %s26, 1
      %p196 = por %p194, %p195
      %p198 = scmp.ne.s32.totalorder %s183, %s197
      %p199 = scmp.eq.s32.totalorder %s26, 0
      %p200 = por %p198, %p199
      %s202 = sadd.s32 %s201, 1
      %p205 = scmp.eq.s32.totalorder %s20, 1
      %p206 = scmp.ne.s32.totalorder %s201, %s203
      %p207 = scmp.eq.s32.totalorder %s20, 0
      %p208 = por %p206, %p207
      %p209 = scmp.ne.s32.totalorder %s201, %s203
      %p210 = scmp.eq.s32.totalorder %s25, 1
      %p211 = por %p209, %p210
      %p212 = scmp.ne.s32.totalorder %s203, %s204
      %p213 = scmp.eq.s32.totalorder %s25, 0
      %p214 = por %p212, %p213
      %p215 = scmp.ne.s32.totalorder %s203, %s204
      %p216 = scmp.eq.s32.totalorder %s26, 1
      %p217 = por %p215, %p216
      %p219 = scmp.ne.s32.totalorder %s204, %s218
      %p220 = scmp.eq.s32.totalorder %s26, 0
      %p221 = por %p219, %p220
      %s223 = sadd.s32 %s222, 1
      %p226 = scmp.eq.s32.totalorder %s20, 1
      %p227 = scmp.ne.s32.totalorder %s222, %s224
      %p228 = scmp.eq.s32.totalorder %s20, 0
      %p229 = por %p227, %p228
      %p230 = scmp.ne.s32.totalorder %s222, %s224
      %p231 = scmp.eq.s32.totalorder %s25, 1
      %p232 = por %p230, %p231
      %p233 = scmp.ne.s32.totalorder %s224, %s225
      %p234 = scmp.eq.s32.totalorder %s25, 0
      %p235 = por %p233, %p234
      %p236 = scmp.ne.s32.totalorder %s224, %s225
      %p237 = scmp.eq.s32.totalorder %s26, 1
      %p238 = por %p236, %p237
      %p240 = scmp.ne.s32.totalorder %s225, %s239
      %p241 = scmp.eq.s32.totalorder %s26, 0
      %p242 = por %p240, %p241
      %s244 = sadd.s32 %s243, 1
      %p247 = scmp.eq.s32.totalorder %s20, 1
      %p248 = scmp.ne.s32.totalorder %s243, %s245
      %p249 = scmp.eq.s32.totalorder %s20, 0
      %p250 = por %p248, %p249
      %p251 = scmp.ne.s32.totalorder %s243, %s245
      %p252 = scmp.eq.s32.totalorder %s25, 1
      %p253 = por %p251, %p252
      %p254 = scmp.ne.s32.totalorder %s245, %s246
      %p255 = scmp.eq.s32.totalorder %s25, 0
      %p256 = por %p254, %p255
      %p257 = scmp.ne.s32.totalorder %s245, %s246
      %p258 = scmp.eq.s32.totalorder %s26, 1
      %p259 = por %p257, %p258
      %p261 = scmp.ne.s32.totalorder %s246, %s260
      %p262 = scmp.eq.s32.totalorder %s26, 0
      %p263 = por %p261, %p262
      %s264 = ssub.s32 %s20, %s27
      %p265 = scmp.eq.s32.totalorder %s264, 0
      %s267 = sadd.s32 %s266, 1
      %s268 = scalar_select %p265, %s266, %s267
      %p271 = pneg %p265
      %p272 = scmp.eq.s32.totalorder %s20, 1
      %p273 = por %p271, %p272
      %p274 = scmp.ne.s32.totalorder %s266, %s269
      %p275 = scmp.eq.s32.totalorder %s20, 0
      %p276 = por %p274, %p275
      %p277 = scmp.ne.s32.totalorder %s266, %s269
      %p278 = scmp.eq.s32.totalorder %s25, 1
      %p279 = por %p277, %p278
      %p280 = scmp.ne.s32.totalorder %s269, %s270
      %p281 = scmp.eq.s32.totalorder %s25, 0
      %p282 = por %p280, %p281
      %p283 = scmp.ne.s32.totalorder %s269, %s270
      %p284 = scmp.eq.s32.totalorder %s26, 1
      %p285 = por %p283, %p284
      %p287 = scmp.ne.s32.totalorder %s270, %s286
      %p288 = scmp.eq.s32.totalorder %s26, 0
      %p289 = por %p287, %p288
      %p290 = scmp.le.s32.totalorder 1, %s20
      %p291 = scmp.lt.s32.totalorder %s20, 3
      %p292 = pnand %p290, %p291
      %p293 = pneg %p292
      // Predicated region
      $region9: #{axial_attention_forward.1} parent=5 // pred_check
        _
      $region10: #{axial_attention_forward.1} parent=5 // pred_check_branch
        %295 = sbr.rel (%p292) target = $region12
      $region11: #{axial_attention_forward.1} parent=5 // pred_region
        %s296 = ssub.s32 %s20, 1
        // Predicated region
        $region13: #{axial_attention_forward.1} parent=11 // pred_check
          %p297 = pneg %p67
        $region14: #{axial_attention_forward.1} parent=11 // pred_check_branch
          %299 = sbr.rel (%p297) target = $region16
        $region15: #{axial_attention_forward.1} parent=11 // pred_region
          _
        $region16: #{axial_attention_forward.1} parent=11 // pred_fallthru
          _
        // Predicated region
        $region17: #{axial_attention_forward.1} parent=11 // pred_check
          %p300 = pneg %p88
        $region18: #{axial_attention_forward.1} parent=11 // pred_check_branch
          %302 = sbr.rel (%p300) target = $region20
        $region19: #{axial_attention_forward.1} parent=11 // pred_region
          _
        $region20: #{axial_attention_forward.1} parent=11 // pred_fallthru
          _
        // Predicated region
        $region21: #{axial_attention_forward.1} parent=11 // pred_check
          %p303 = pneg %p109
        $region22: #{axial_attention_forward.1} parent=11 // pred_check_branch
          %305 = sbr.rel (%p303) target = $region24
        $region23: #{axial_attention_forward.1} parent=11 // pred_region
          _
        $region24: #{axial_attention_forward.1} parent=11 // pred_fallthru
          _
        // Predicated region
        $region25: #{axial_attention_forward.1} parent=11 // pred_check
          %p306 = pneg %p130
        $region26: #{axial_attention_forward.1} parent=11 // pred_check_branch
          %308 = sbr.rel (%p306) target = $region28
        $region27: #{axial_attention_forward.1} parent=11 // pred_region
          _
        $region28: #{axial_attention_forward.1} parent=11 // pred_fallthru
          _
        // Predicated region
        $region29: #{axial_attention_forward.1} parent=11 // pred_check
          %p309 = pneg %p151
        $region30: #{axial_attention_forward.1} parent=11 // pred_check_branch
          %311 = sbr.rel (%p309) target = $region32
        $region31: #{axial_attention_forward.1} parent=11 // pred_region
          _
        $region32: #{axial_attention_forward.1} parent=11 // pred_fallthru
          _
        // Predicated region
        $region33: #{axial_attention_forward.1} parent=11 // pred_check
          %p312 = pneg %p172
        $region34: #{axial_attention_forward.1} parent=11 // pred_check_branch
          %314 = sbr.rel (%p312) target = $region36
        $region35: #{axial_attention_forward.1} parent=11 // pred_region
          _
        $region36: #{axial_attention_forward.1} parent=11 // pred_fallthru
          _
        // Predicated region
        $region37: #{axial_attention_forward.1} parent=11 // pred_check
          %p315 = pneg %p193
        $region38: #{axial_attention_forward.1} parent=11 // pred_check_branch
          %317 = sbr.rel (%p315) target = $region40
        $region39: #{axial_attention_forward.1} parent=11 // pred_region
          _
        $region40: #{axial_attention_forward.1} parent=11 // pred_fallthru
          _
        // Predicated region
        $region41: #{axial_attention_forward.1} parent=11 // pred_check
          %p318 = pneg %p214
        $region42: #{axial_attention_forward.1} parent=11 // pred_check_branch
          %320 = sbr.rel (%p318) target = $region44
        $region43: #{axial_attention_forward.1} parent=11 // pred_region
          _
        $region44: #{axial_attention_forward.1} parent=11 // pred_fallthru
          _
        // Predicated region
        $region45: #{axial_attention_forward.1} parent=11 // pred_check
          %p321 = pneg %p235
        $region46: #{axial_attention_forward.1} parent=11 // pred_check_branch
          %323 = sbr.rel (%p321) target = $region48
        $region47: #{axial_attention_forward.1} parent=11 // pred_region
          _
        $region48: #{axial_attention_forward.1} parent=11 // pred_fallthru
          _
        // Predicated region
        $region49: #{axial_attention_forward.1} parent=11 // pred_check
          %p324 = pneg %p256
        $region50: #{axial_attention_forward.1} parent=11 // pred_check_branch
          %326 = sbr.rel (%p324) target = $region52
        $region51: #{axial_attention_forward.1} parent=11 // pred_region
          _
        $region52: #{axial_attention_forward.1} parent=11 // pred_fallthru
          _
      $region12: #{axial_attention_forward.1} parent=5 // pred_fallthru
        _
      %p327 = scmp.lt.s32.totalorder %s20, 2
      // Predicated region
      $region53: #{axial_attention_forward.1} parent=5 // pred_check
        %p328 = pneg %p327
      $region54: #{axial_attention_forward.1} parent=5 // pred_check_branch
        %330 = sbr.rel (%p328) target = $region56
      $region55: #{axial_attention_forward.1} parent=5 // pred_region
        // Predicated region
        $region57: #{axial_attention_forward.1} parent=55 // pred_check
          %p331 = pneg %p40
        $region58: #{axial_attention_forward.1} parent=55 // pred_check_branch
          %333 = sbr.rel (%p331) target = $region60
        $region59: #{axial_attention_forward.1} parent=55 // pred_region
          %p334 = scmp.lt.s32.totalorder %s20, 1
          %s335 = scalar_select %p334, %s20, 1
          %s336 = smul.addr %s335, 4
          %s337 = scalar_lea.vmem %s0, %s336
        $region60: #{axial_attention_forward.1} parent=55 // pred_fallthru
          _
      $region56: #{axial_attention_forward.1} parent=5 // pred_fallthru
        _
      %p338 = scmp.le.s32.totalorder 1, %s20
      %p339 = scmp.lt.s32.totalorder %s20, 3
      %p340 = pnand %p338, %p339
      %p341 = pneg %p340
      // Predicated region
      $region61: #{axial_attention_forward.1} parent=5 // pred_check
        _
      $region62: #{axial_attention_forward.1} parent=5 // pred_check_branch
        %343 = sbr.rel (%p340) target = $region64
      $region63: #{axial_attention_forward.1} parent=5 // pred_region
        %s344 = ssub.s32 %s20, 1
        %p345 = scmp.lt.s32.totalorder %s25, 1
        %s346 = scalar_select %p345, %s25, 1
        %s347 = smul.addr %s346, 4
        %s348 = scalar_lea.vmem %s0, %s347
        %p349 = pneg %p46
        %p350 = pneg %p43
        %p351 = pneg %p67
        %p352 = pneg %p64
        %p353 = pneg %p88
        %p354 = pneg %p85
        %p355 = pneg %p109
        %p356 = pneg %p106
        %p357 = pneg %p130
        %p358 = pneg %p127
        %p359 = pneg %p151
        %p360 = pneg %p148
        %p361 = pneg %p172
        %p362 = pneg %p169
        %p363 = pneg %p193
        %p364 = pneg %p190
        %p365 = pneg %p214
        %p366 = pneg %p211
        %p367 = pneg %p235
        %p368 = pneg %p232
        %p369 = pneg %p256
        %p370 = pneg %p253
        %p371 = pneg %p282
        %p372 = pneg %p279
        %s373 = sand.u32 %s269, 1
        %s374 = scalar_lea.sflag [#allocation3], %s373
        %s375 = sand.u32 %s269, 1
        %s376 = smul.addr %s375, 8
        %s377 = scalar_lea.vmem [#allocation2], %s376
        %p378 = scmp.lt.s32.totalorder %s25, 1
        %s379 = scalar_select %p378, %s25, 1
        %s380 = smul.addr %s379, 4
        %s381 = scalar_lea.vmem %s0, %s380
        %v383 = vld [vmem:[%s381] sm:$0xf]
        %v384 = vld [vmem:[%s1] sm:$0xf]
        %v385 = vld [vmem:[%s1 + $0x4] sm:$0xf]
        %v386 = vld [vmem:[%s1 + $0x8] sm:$0xf]
        %v387 = vld [vmem:[%s1 + $0xc] sm:$0xf]
        %v392 = vunpack.c.l.b16 %v384
        %v393 = vunpack.c.l.b16 %v385
        %v394 = vunpack.c.l.b16 %v386
        %v395 = vunpack.c.l.b16 %v387
        %v396 = vpack.c.b16 %v393, %v392
        %v397 = vpack.c.b16 %v395, %v394
        %vm398 = vcmask 64512
        %v400 = vsel %vm398, %v396, 0
        %v403 = vsel %vm398, %v397, 0
        %vm405 = vcmask 1043456
        %v407 = vsel %vm405, %v383, 0
        %409 = vmatprep.subr.bf16.mxu0 0
        %410 = vmatpush1.bf16.msra.mxu0 %v407
        %411 = vmatprep.subr.bf16.mxu0 0
        %412 = vmatpush1.bf16.msra.mxu0 0
        %413 = vmatprep.subr.bf16.mxu0 0
        %414 = vmatpush1.bf16.msra.mxu0 0
        %415 = vmatprep.subr.bf16.mxu0 0
        %416 = vmatpush1.bf16.msra.mxu0 0
        %417 = vmatprep.subr.bf16.mxu0 0
        %418 = vmatpush1.bf16.msra.mxu0 0
        %419 = vmatprep.subr.bf16.mxu0 0
        %420 = vmatpush1.bf16.msra.mxu0 0
        %421 = vmatprep.subr.bf16.mxu0 0
        %422 = vmatpush1.bf16.msra.mxu0 0
        %423 = vmatprep.subr.bf16.mxu0 0
        %424 = vmatpush1.bf16.msra.mxu0 0
        %425 = vmatprep.subr.bf16.mxu0 0
        %426 = vmatpush1.bf16.msra.mxu0 0
        %427 = vmatprep.subr.bf16.mxu0 0
        %428 = vmatpush1.bf16.msra.mxu0 0
        %429 = vmatprep.subr.bf16.mxu0 0
        %430 = vmatpush1.bf16.msra.mxu0 0
        %431 = vmatprep.subr.bf16.mxu0 0
        %432 = vmatpush1.bf16.msra.mxu0 0
        %433 = vmatprep.subr.bf16.mxu0 0
        %434 = vmatpush1.bf16.msra.mxu0 0
        %435 = vmatprep.subr.bf16.mxu0 0
        %436 = vmatpush1.bf16.msra.mxu0 0
        %437 = vmatprep.subr.bf16.mxu0 0
        %438 = vmatpush1.bf16.msra.mxu0 0
        %439 = vmatprep.subr.bf16.mxu0 0
        %440 = vmatpush1.bf16.msra.mxu0 0
        %441 = vmatprep.mubr.bf16.mxu0 0
        %442 = vmatmul.mubr.bf16.gmra.mrb[0].mxu0 %v400
        %v443 = vpop.f32.mrb[0].mxu0
        %v444 = vadd.f32 0.0, %v443
        %v445 = vpop.f32.mrb[0].mxu0
        %v446 = vpop.f32.mrb[0].mxu0
        %v447 = vadd.f32 0.0, %v446
        %v448 = vpop.f32.mrb[0].mxu0
        %449 = vmatprep.mubr.bf16.mxu0 0
        %450 = vmatmul.mubr.bf16.gmra.mrb[0].mxu0 %v403
        %v451 = vpop.f32.mrb[0].mxu0
        %v452 = vadd.f32 0.0, %v451
        %v453 = vpop.f32.mrb[0].mxu0
        %v454 = vpop.f32.mrb[0].mxu0
        %v455 = vadd.f32 0.0, %v454
        %v456 = vpop.f32.mrb[0].mxu0
        %457 = vdwg.mxu0
        %v458 = vpack.c.bf16 %v447, %v444
        %v459 = vpack.c.bf16 %v455, %v452
        %v460 = vld [vmem:[%s2] sm:$0xf]
        %v461 = vld [vmem:[%s2 + $0x4] sm:$0xf]
        %v462 = vld [vmem:[%s2 + $0x8] sm:$0xf]
        %v463 = vld [vmem:[%s2 + $0xc] sm:$0xf]
        %v468 = vunpack.c.l.b16 %v460
        %v469 = vunpack.c.l.b16 %v461
        %v470 = vunpack.c.l.b16 %v462
        %v471 = vunpack.c.l.b16 %v463
        %v472 = vpack.c.b16 %v469, %v468
        %v473 = vpack.c.b16 %v471, %v470
        %v476 = vmul.bf16 %v458, %v472
        %v477 = vmul.bf16 %v459, %v473
        %v478 = vld [vmem:[%s3] sm:$0xff]
        %v479 = vld [vmem:[%s3 + $0x8] sm:$0xff]
        %v480 = vld [vmem:[%s3 + $0x10] sm:$0xff]
        %v481 = vld [vmem:[%s3 + $0x18] sm:$0xff]
        %v482 = vld [vmem:[%s3 + $0x20] sm:$0xff]
        %v483 = vld [vmem:[%s3 + $0x28] sm:$0xff]
        %v484 = vld [vmem:[%s3 + $0x30] sm:$0xff]
        %v485 = vld [vmem:[%s3 + $0x38] sm:$0xff]
        %v486 = vld [vmem:[%s3 + $0x40] sm:$0xff]
        %v487 = vld [vmem:[%s3 + $0x48] sm:$0xff]
        %v488 = vld [vmem:[%s3 + $0x50] sm:$0xff]
        %v489 = vld [vmem:[%s3 + $0x58] sm:$0xff]
        %v490 = vld [vmem:[%s3 + $0x60] sm:$0xff]
        %v491 = vld [vmem:[%s3 + $0x68] sm:$0xff]
        %v492 = vld [vmem:[%s3 + $0x70] sm:$0xff]
        %v493 = vld [vmem:[%s3 + $0x78] sm:$0xff]
        %v510 = vunpack.c.l.b16 %v478
        %v511 = vunpack.c.h.b16 %v478
        %v512 = vunpack.c.l.b16 %v479
        %v513 = vunpack.c.h.b16 %v479
        %v514 = vunpack.c.l.b16 %v480
        %v515 = vunpack.c.h.b16 %v480
        %v516 = vunpack.c.l.b16 %v481
        %v517 = vunpack.c.h.b16 %v481
        %v518 = vunpack.c.l.b16 %v482
        %v519 = vunpack.c.h.b16 %v482
        %v520 = vunpack.c.l.b16 %v483
        %v521 = vunpack.c.h.b16 %v483
        %v522 = vunpack.c.l.b16 %v484
        %v523 = vunpack.c.h.b16 %v484
        %v524 = vunpack.c.l.b16 %v485
        %v525 = vunpack.c.h.b16 %v485
        %v526 = vunpack.c.l.b16 %v486
        %v527 = vunpack.c.h.b16 %v486
        %v528 = vunpack.c.l.b16 %v487
        %v529 = vunpack.c.h.b16 %v487
        %v530 = vunpack.c.l.b16 %v488
        %v531 = vunpack.c.h.b16 %v488
        %v532 = vunpack.c.l.b16 %v489
        %v533 = vunpack.c.h.b16 %v489
        %v534 = vunpack.c.l.b16 %v490
        %v535 = vunpack.c.h.b16 %v490
        %v536 = vunpack.c.l.b16 %v491
        %v537 = vunpack.c.h.b16 %v491
        %v538 = vunpack.c.l.b16 %v492
        %v539 = vunpack.c.h.b16 %v492
        %v540 = vunpack.c.l.b16 %v493
        %v541 = vunpack.c.h.b16 %v493
        %v542 = vpack.c.b16 %v512, %v510
        %v543 = vpack.c.b16 %v513, %v511
        %v544 = vpack.c.b16 %v516, %v514
        %v545 = vpack.c.b16 %v517, %v515
        %v546 = vpack.c.b16 %v520, %v518
        %v547 = vpack.c.b16 %v521, %v519
        %v548 = vpack.c.b16 %v524, %v522
        %v549 = vpack.c.b16 %v525, %v523
        %v550 = vpack.c.b16 %v528, %v526
        %v551 = vpack.c.b16 %v529, %v527
        %v552 = vpack.c.b16 %v532, %v530
        %v553 = vpack.c.b16 %v533, %v531
        %v554 = vpack.c.b16 %v536, %v534
        %v555 = vpack.c.b16 %v537, %v535
        %v556 = vpack.c.b16 %v540, %v538
        %v557 = vpack.c.b16 %v541, %v539
        %574 = vmatprep.subr.bf16.mxu0 %v543
        %575 = vmatpush1.bf16.msra.mxu0 %v542
        %576 = vmatprep.subr.bf16.mxu0 %v545
        %577 = vmatpush1.bf16.msra.mxu0 %v544
        %578 = vmatprep.subr.bf16.mxu0 %v547
        %579 = vmatpush1.bf16.msra.mxu0 %v546
        %580 = vmatprep.subr.bf16.mxu0 %v549
        %581 = vmatpush1.bf16.msra.mxu0 %v548
        %582 = vmatprep.subr.bf16.mxu0 %v551
        %583 = vmatpush1.bf16.msra.mxu0 %v550
        %584 = vmatprep.subr.bf16.mxu0 %v553
        %585 = vmatpush1.bf16.msra.mxu0 %v552
        %586 = vmatprep.subr.bf16.mxu0 %v555
        %587 = vmatpush1.bf16.msra.mxu0 %v554
        %588 = vmatprep.subr.bf16.mxu0 %v557
        %589 = vmatpush1.bf16.msra.mxu0 %v556
        %590 = vmatprep.subr.bf16.mxu0 0
        %591 = vmatpush1.bf16.msra.mxu0 0
        %592 = vmatprep.subr.bf16.mxu0 0
        %593 = vmatpush1.bf16.msra.mxu0 0
        %594 = vmatprep.subr.bf16.mxu0 0
        %595 = vmatpush1.bf16.msra.mxu0 0
        %596 = vmatprep.subr.bf16.mxu0 0
        %597 = vmatpush1.bf16.msra.mxu0 0
        %598 = vmatprep.subr.bf16.mxu0 0
        %599 = vmatpush1.bf16.msra.mxu0 0
        %600 = vmatprep.subr.bf16.mxu0 0
        %601 = vmatpush1.bf16.msra.mxu0 0
        %602 = vmatprep.subr.bf16.mxu0 0
        %603 = vmatpush1.bf16.msra.mxu0 0
        %604 = vmatprep.subr.bf16.mxu0 0
        %605 = vmatpush1.bf16.msra.mxu0 0
        %606 = vmatprep.mubr.bf16.mxu0 0
        %607 = vmatmul.mubr.bf16.gmra.mrb[0].mxu0 %v476
        %v608 = vpop.f32.mrb[0].mxu0
        %v609 = vadd.f32 0.0, %v608
        %v610 = vpop.f32.mrb[0].mxu0
        %v611 = vadd.f32 0.0, %v610
        %v612 = vpop.f32.mrb[0].mxu0
        %v613 = vadd.f32 0.0, %v612
        %v614 = vpop.f32.mrb[0].mxu0
        %v615 = vadd.f32 0.0, %v614
        %616 = vmatprep.mubr.bf16.mxu0 0
        %617 = vmatmul.mubr.bf16.gmra.mrb[0].mxu0 %v477
        %v618 = vpop.f32.mrb[0].mxu0
        %v619 = vadd.f32 0.0, %v618
        %v620 = vpop.f32.mrb[0].mxu0
        %v621 = vadd.f32 0.0, %v620
        %v622 = vpop.f32.mrb[0].mxu0
        %v623 = vadd.f32 0.0, %v622
        %v624 = vpop.f32.mrb[0].mxu0
        %v625 = vadd.f32 0.0, %v624
        %626 = vdwg.mxu0
        %v627 = vpack.c.bf16 %v613, %v609
        %v628 = vpack.c.bf16 %v623, %v619
        %v629 = vpack.c.bf16 %v615, %v611
        %v630 = vpack.c.bf16 %v625, %v621
        %v631 = vld [vmem:[%s4] sm:$0xf]
        %v632 = vld [vmem:[%s4 + $0x4] sm:$0xf]
        %v633 = vld [vmem:[%s4 + $0x8] sm:$0xf]
        %v634 = vld [vmem:[%s4 + $0xc] sm:$0xf]
        %v635 = vld [vmem:[%s4 + $0x10] sm:$0xf]
        %v636 = vld [vmem:[%s4 + $0x14] sm:$0xf]
        %v637 = vld [vmem:[%s4 + $0x18] sm:$0xf]
        %v638 = vld [vmem:[%s4 + $0x1c] sm:$0xf]
        %v639 = vld [vmem:[%s4 + $0x20] sm:$0xf]
        %v640 = vld [vmem:[%s4 + $0x24] sm:$0xf]
        %v641 = vld [vmem:[%s4 + $0x28] sm:$0xf]
        %v642 = vld [vmem:[%s4 + $0x2c] sm:$0xf]
        %v643 = vld [vmem:[%s4 + $0x30] sm:$0xf]
        %v644 = vld [vmem:[%s4 + $0x34] sm:$0xf]
        %v645 = vld [vmem:[%s4 + $0x38] sm:$0xf]
        %v646 = vld [vmem:[%s4 + $0x3c] sm:$0xf]
        %v647 = vld [vmem:[%s4 + $0x40] sm:$0xf]
        %v648 = vld [vmem:[%s4 + $0x44] sm:$0xf]
        %v649 = vld [vmem:[%s4 + $0x48] sm:$0xf]
        %v650 = vld [vmem:[%s4 + $0x4c] sm:$0xf]
        %v651 = vld [vmem:[%s4 + $0x50] sm:$0xf]
        %v652 = vld [vmem:[%s4 + $0x54] sm:$0xf]
        %v653 = vld [vmem:[%s4 + $0x58] sm:$0xf]
        %v654 = vld [vmem:[%s4 + $0x5c] sm:$0xf]
        %v655 = vld [vmem:[%s4 + $0x60] sm:$0xf]
        %v656 = vld [vmem:[%s4 + $0x64] sm:$0xf]
        %v657 = vld [vmem:[%s4 + $0x68] sm:$0xf]
        %v658 = vld [vmem:[%s4 + $0x6c] sm:$0xf]
        %v659 = vld [vmem:[%s4 + $0x70] sm:$0xf]
        %v660 = vld [vmem:[%s4 + $0x74] sm:$0xf]
        %v661 = vld [vmem:[%s4 + $0x78] sm:$0xf]
        %v662 = vld [vmem:[%s4 + $0x7c] sm:$0xf]
        %v663 = vld [vmem:[%s4 + $0x80] sm:$0xf]
        %v664 = vld [vmem:[%s4 + $0x84] sm:$0xf]
        %v665 = vld [vmem:[%s4 + $0x88] sm:$0xf]
        %v666 = vld [vmem:[%s4 + $0x8c] sm:$0xf]
        %v667 = vld [vmem:[%s4 + $0x90] sm:$0xf]
        %v668 = vld [vmem:[%s4 + $0x94] sm:$0xf]
        %v669 = vld [vmem:[%s4 + $0x98] sm:$0xf]
        %v670 = vld [vmem:[%s4 + $0x9c] sm:$0xf]
        %v671 = vld [vmem:[%s4 + $0xa0] sm:$0xf]
        %v672 = vld [vmem:[%s4 + $0xa4] sm:$0xf]
        %v673 = vld [vmem:[%s4 + $0xa8] sm:$0xf]
        %v674 = vld [vmem:[%s4 + $0xac] sm:$0xf]
        %v675 = vld [vmem:[%s4 + $0xb0] sm:$0xf]
        %v676 = vld [vmem:[%s4 + $0xb4] sm:$0xf]
        %v677 = vld [vmem:[%s4 + $0xb8] sm:$0xf]
        %v678 = vld [vmem:[%s4 + $0xbc] sm:$0xf]
        %v679 = vld [vmem:[%s4 + $0xc0] sm:$0xf]
        %v680 = vld [vmem:[%s4 + $0xc4] sm:$0xf]
        %v681 = vld [vmem:[%s4 + $0xc8] sm:$0xf]
        %v682 = vld [vmem:[%s4 + $0xcc] sm:$0xf]
        %v683 = vld [vmem:[%s4 + $0xd0] sm:$0xf]
        %v684 = vld [vmem:[%s4 + $0xd4] sm:$0xf]
        %v685 = vld [vmem:[%s4 + $0xd8] sm:$0xf]
        %v686 = vld [vmem:[%s4 + $0xdc] sm:$0xf]
        %v687 = vld [vmem:[%s4 + $0xe0] sm:$0xf]
        %v688 = vld [vmem:[%s4 + $0xe4] sm:$0xf]
        %v689 = vld [vmem:[%s4 + $0xe8] sm:$0xf]
        %v690 = vld [vmem:[%s4 + $0xec] sm:$0xf]
        %v691 = vld [vmem:[%s4 + $0xf0] sm:$0xf]
        %v692 = vld [vmem:[%s4 + $0xf4] sm:$0xf]
        %v693 = vld [vmem:[%s4 + $0xf8] sm:$0xf]
        %v694 = vld [vmem:[%s4 + $0xfc] sm:$0xf]
        %v759 = vunpack.c.l.b16 %v631
        %v760 = vunpack.c.l.b16 %v632
        %v761 = vunpack.c.l.b16 %v633
        %v762 = vunpack.c.l.b16 %v634
        %v763 = vunpack.c.l.b16 %v635
        %v764 = vunpack.c.l.b16 %v636
        %v765 = vunpack.c.l.b16 %v637
        %v766 = vunpack.c.l.b16 %v638
        %v767 = vunpack.c.l.b16 %v639
        %v768 = vunpack.c.l.b16 %v640
        %v769 = vunpack.c.l.b16 %v641
        %v770 = vunpack.c.l.b16 %v642
        %v771 = vunpack.c.l.b16 %v643
        %v772 = vunpack.c.l.b16 %v644
        %v773 = vunpack.c.l.b16 %v645
        %v774 = vunpack.c.l.b16 %v646
        %v775 = vunpack.c.l.b16 %v647
        %v776 = vunpack.c.l.b16 %v648
        %v777 = vunpack.c.l.b16 %v649
        %v778 = vunpack.c.l.b16 %v650
        %v779 = vunpack.c.l.b16 %v651
        %v780 = vunpack.c.l.b16 %v652
        %v781 = vunpack.c.l.b16 %v653
        %v782 = vunpack.c.l.b16 %v654
        %v783 = vunpack.c.l.b16 %v655
        %v784 = vunpack.c.l.b16 %v656
        %v785 = vunpack.c.l.b16 %v657
        %v786 = vunpack.c.l.b16 %v658
        %v787 = vunpack.c.l.b16 %v659
        %v788 = vunpack.c.l.b16 %v660
        %v789 = vunpack.c.l.b16 %v661
        %v790 = vunpack.c.l.b16 %v662
        %v791 = vunpack.c.l.b16 %v663
        %v792 = vunpack.c.l.b16 %v664
        %v793 = vunpack.c.l.b16 %v665
        %v794 = vunpack.c.l.b16 %v666
        %v795 = vunpack.c.l.b16 %v667
        %v796 = vunpack.c.l.b16 %v668
        %v797 = vunpack.c.l.b16 %v669
        %v798 = vunpack.c.l.b16 %v670
        %v799 = vunpack.c.l.b16 %v671
        %v800 = vunpack.c.l.b16 %v672
        %v801 = vunpack.c.l.b16 %v673
        %v802 = vunpack.c.l.b16 %v674
        %v803 = vunpack.c.l.b16 %v675
        %v804 = vunpack.c.l.b16 %v676
        %v805 = vunpack.c.l.b16 %v677
        %v806 = vunpack.c.l.b16 %v678
        %v807 = vunpack.c.l.b16 %v679
        %v808 = vunpack.c.l.b16 %v680
        %v809 = vunpack.c.l.b16 %v681
        %v810 = vunpack.c.l.b16 %v682
        %v811 = vunpack.c.l.b16 %v683
        %v812 = vunpack.c.l.b16 %v684
        %v813 = vunpack.c.l.b16 %v685
        %v814 = vunpack.c.l.b16 %v686
        %v815 = vunpack.c.l.b16 %v687
        %v816 = vunpack.c.l.b16 %v688
        %v817 = vunpack.c.l.b16 %v689
        %v818 = vunpack.c.l.b16 %v690
        %v819 = vunpack.c.l.b16 %v691
        %v820 = vunpack.c.l.b16 %v692
        %v821 = vunpack.c.l.b16 %v693
        %v822 = vunpack.c.l.b16 %v694
        %v823 = vpack.c.b16 %v760, %v759
        %v824 = vpack.c.b16 %v762, %v761
        %v825 = vpack.c.b16 %v764, %v763
        %v826 = vpack.c.b16 %v766, %v765
        %v827 = vpack.c.b16 %v768, %v767
        %v828 = vpack.c.b16 %v770, %v769
        %v829 = vpack.c.b16 %v772, %v771
        %v830 = vpack.c.b16 %v774, %v773
        %v831 = vpack.c.b16 %v776, %v775
        %v832 = vpack.c.b16 %v778, %v777
        %v833 = vpack.c.b16 %v780, %v779
        %v834 = vpack.c.b16 %v782, %v781
        %v835 = vpack.c.b16 %v784, %v783
        %v836 = vpack.c.b16 %v786, %v785
        %v837 = vpack.c.b16 %v788, %v787
        %v838 = vpack.c.b16 %v790, %v789
        %v839 = vpack.c.b16 %v792, %v791
        %v840 = vpack.c.b16 %v794, %v793
        %v841 = vpack.c.b16 %v796, %v795
        %v842 = vpack.c.b16 %v798, %v797
        %v843 = vpack.c.b16 %v800, %v799
        %v844 = vpack.c.b16 %v802, %v801
        %v845 = vpack.c.b16 %v804, %v803
        %v846 = vpack.c.b16 %v806, %v805
        %v847 = vpack.c.b16 %v808, %v807
        %v848 = vpack.c.b16 %v810, %v809
        %v849 = vpack.c.b16 %v812, %v811
        %v850 = vpack.c.b16 %v814, %v813
        %v851 = vpack.c.b16 %v816, %v815
        %v852 = vpack.c.b16 %v818, %v817
        %v853 = vpack.c.b16 %v820, %v819
        %v854 = vpack.c.b16 %v822, %v821
        %855 = vrot.lane.b32.xlu0 %v823, 64
        %v856 = vpop.permute.xlu0 %855
        %857 = vrot.lane.b32.xlu0 %v824, 64
        %v858 = vpop.permute.xlu0 %857
        %859 = vrot.lane.b32.xlu0 %v825, 64
        %v860 = vpop.permute.xlu0 %859
        %861 = vrot.lane.b32.xlu0 %v826, 64
        %v862 = vpop.permute.xlu0 %861
        %863 = vrot.lane.b32.xlu0 %v827, 64
        %v864 = vpop.permute.xlu0 %863
        %865 = vrot.lane.b32.xlu0 %v828, 64
        %v866 = vpop.permute.xlu0 %865
        %867 = vrot.lane.b32.xlu0 %v829, 64
        %v868 = vpop.permute.xlu0 %867
        %869 = vrot.lane.b32.xlu0 %v830, 64
        %v870 = vpop.permute.xlu0 %869
        %871 = vrot.lane.b32.xlu0 %v831, 64
        %v872 = vpop.permute.xlu0 %871
        %873 = vrot.lane.b32.xlu0 %v832, 64
        %v874 = vpop.permute.xlu0 %873
        %875 = vrot.lane.b32.xlu0 %v833, 64
        %v876 = vpop.permute.xlu0 %875
        %877 = vrot.lane.b32.xlu0 %v834, 64
        %v878 = vpop.permute.xlu0 %877
        %879 = vrot.lane.b32.xlu0 %v835, 64
        %v880 = vpop.permute.xlu0 %879
        %881 = vrot.lane.b32.xlu0 %v836, 64
        %v882 = vpop.permute.xlu0 %881
        %883 = vrot.lane.b32.xlu0 %v837, 64
        %v884 = vpop.permute.xlu0 %883
        %885 = vrot.lane.b32.xlu0 %v838, 64
        %v886 = vpop.permute.xlu0 %885
        %887 = vrot.lane.b32.xlu0 %v839, 64
        %v888 = vpop.permute.xlu0 %887
        %889 = vrot.lane.b32.xlu0 %v840, 64
        %v890 = vpop.permute.xlu0 %889
        %891 = vrot.lane.b32.xlu0 %v841, 64
        %v892 = vpop.permute.xlu0 %891
        %893 = vrot.lane.b32.xlu0 %v842, 64
        %v894 = vpop.permute.xlu0 %893
        %895 = vrot.lane.b32.xlu0 %v843, 64
        %v896 = vpop.permute.xlu0 %895
        %897 = vrot.lane.b32.xlu0 %v844, 64
        %v898 = vpop.permute.xlu0 %897
        %899 = vrot.lane.b32.xlu0 %v845, 64
        %v900 = vpop.permute.xlu0 %899
        %901 = vrot.lane.b32.xlu0 %v846, 64
        %v902 = vpop.permute.xlu0 %901
        %903 = vrot.lane.b32.xlu0 %v847, 64
        %v904 = vpop.permute.xlu0 %903
        %905 = vrot.lane.b32.xlu0 %v848, 64
        %v906 = vpop.permute.xlu0 %905
        %907 = vrot.lane.b32.xlu0 %v849, 64
        %v908 = vpop.permute.xlu0 %907
        %909 = vrot.lane.b32.xlu0 %v850, 64
        %v910 = vpop.permute.xlu0 %909
        %911 = vrot.lane.b32.xlu0 %v851, 64
        %v912 = vpop.permute.xlu0 %911
        %913 = vrot.lane.b32.xlu0 %v852, 64
        %v914 = vpop.permute.xlu0 %913
        %915 = vrot.lane.b32.xlu0 %v853, 64
        %v916 = vpop.permute.xlu0 %915
        %917 = vrot.lane.b32.xlu0 %v854, 64
        %v918 = vpop.permute.xlu0 %917
        %v951 = vmul.bf16 %v627, %v856
        %v952 = vmul.bf16 %v628, %v858
        %v953 = vmul.bf16 %v627, %v860
        %v954 = vmul.bf16 %v628, %v862
        %v955 = vmul.bf16 %v627, %v864
        %v956 = vmul.bf16 %v628, %v866
        %v957 = vmul.bf16 %v627, %v868
        %v958 = vmul.bf16 %v628, %v870
        %v959 = vmul.bf16 %v627, %v872
        %v960 = vmul.bf16 %v628, %v874
        %v961 = vmul.bf16 %v627, %v876
        %v962 = vmul.bf16 %v628, %v878
        %v963 = vmul.bf16 %v627, %v880
        %v964 = vmul.bf16 %v628, %v882
        %v965 = vmul.bf16 %v627, %v884
        %v966 = vmul.bf16 %v628, %v886
        %v967 = vmul.bf16 %v627, %v888
        %v968 = vmul.bf16 %v628, %v890
        %v969 = vmul.bf16 %v627, %v892
        %v970 = vmul.bf16 %v628, %v894
        %v971 = vmul.bf16 %v627, %v896
        %v972 = vmul.bf16 %v628, %v898
        %v973 = vmul.bf16 %v627, %v900
        %v974 = vmul.bf16 %v628, %v902
        %v975 = vmul.bf16 %v627, %v904
        %v976 = vmul.bf16 %v628, %v906
        %v977 = vmul.bf16 %v627, %v908
        %v978 = vmul.bf16 %v628, %v910
        %v979 = vmul.bf16 %v627, %v912
        %v980 = vmul.bf16 %v628, %v914
        %v981 = vmul.bf16 %v627, %v916
        %v982 = vmul.bf16 %v628, %v918
        %v1015 = vmul.bf16 %v629, %v823
        %v1016 = vmul.bf16 %v630, %v824
        %v1017 = vmul.bf16 %v629, %v825
        %v1018 = vmul.bf16 %v630, %v826
        %v1019 = vmul.bf16 %v629, %v827
        %v1020 = vmul.bf16 %v630, %v828
        %v1021 = vmul.bf16 %v629, %v829
        %v1022 = vmul.bf16 %v630, %v830
        %v1023 = vmul.bf16 %v629, %v831
        %v1024 = vmul.bf16 %v630, %v832
        %v1025 = vmul.bf16 %v629, %v833
        %v1026 = vmul.bf16 %v630, %v834
        %v1027 = vmul.bf16 %v629, %v835
        %v1028 = vmul.bf16 %v630, %v836
        %v1029 = vmul.bf16 %v629, %v837
        %v1030 = vmul.bf16 %v630, %v838
        %v1031 = vmul.bf16 %v629, %v839
        %v1032 = vmul.bf16 %v630, %v840
        %v1033 = vmul.bf16 %v629, %v841
        %v1034 = vmul.bf16 %v630, %v842
        %v1035 = vmul.bf16 %v629, %v843
        %v1036 = vmul.bf16 %v630, %v844
        %v1037 = vmul.bf16 %v629, %v845
        %v1038 = vmul.bf16 %v630, %v846
        %v1039 = vmul.bf16 %v629, %v847
        %v1040 = vmul.bf16 %v630, %v848
        %v1041 = vmul.bf16 %v629, %v849
        %v1042 = vmul.bf16 %v630, %v850
        %v1043 = vmul.bf16 %v629, %v851
        %v1044 = vmul.bf16 %v630, %v852
        %v1045 = vmul.bf16 %v629, %v853
        %v1046 = vmul.bf16 %v630, %v854
        %v1047 = vld [vmem:[%s5] sm:$0xff]
        %v1048 = vld [vmem:[%s5 + $0x8] sm:$0xff]
        %v1049 = vld [vmem:[%s5 + $0x10] sm:$0xff]
        %v1050 = vld [vmem:[%s5 + $0x18] sm:$0xff]
        %v1051 = vld [vmem:[%s5 + $0x20] sm:$0xff]
        %v1052 = vld [vmem:[%s5 + $0x28] sm:$0xff]
        %v1053 = vld [vmem:[%s5 + $0x30] sm:$0xff]
        %v1054 = vld [vmem:[%s5 + $0x38] sm:$0xff]
        %v1055 = vld [vmem:[%s5 + $0x40] sm:$0xff]
        %v1056 = vld [vmem:[%s5 + $0x48] sm:$0xff]
        %v1057 = vld [vmem:[%s5 + $0x50] sm:$0xff]
        %v1058 = vld [vmem:[%s5 + $0x58] sm:$0xff]
        %v1059 = vld [vmem:[%s5 + $0x60] sm:$0xff]
        %v1060 = vld [vmem:[%s5 + $0x68] sm:$0xff]
        %v1061 = vld [vmem:[%s5 + $0x70] sm:$0xff]
        %v1062 = vld [vmem:[%s5 + $0x78] sm:$0xff]
        %1095 = vrot.lane.b32.xlu0 %v951, 64
        %v1096 = vpop.permute.xlu0 %1095
        %1097 = vrot.lane.b32.xlu0 %v952, 64
        %v1098 = vpop.permute.xlu0 %1097
        %1099 = vrot.lane.b32.xlu0 %v953, 64
        %v1100 = vpop.permute.xlu0 %1099
        %1101 = vrot.lane.b32.xlu0 %v954, 64
        %v1102 = vpop.permute.xlu0 %1101
        %1103 = vrot.lane.b32.xlu0 %v955, 64
        %v1104 = vpop.permute.xlu0 %1103
        %1105 = vrot.lane.b32.xlu0 %v956, 64
        %v1106 = vpop.permute.xlu0 %1105
        %1107 = vrot.lane.b32.xlu0 %v957, 64
        %v1108 = vpop.permute.xlu0 %1107
        %1109 = vrot.lane.b32.xlu0 %v958, 64
        %v1110 = vpop.permute.xlu0 %1109
        %1111 = vrot.lane.b32.xlu0 %v959, 64
        %v1112 = vpop.permute.xlu0 %1111
        %1113 = vrot.lane.b32.xlu0 %v960, 64
        %v1114 = vpop.permute.xlu0 %1113
        %1115 = vrot.lane.b32.xlu0 %v961, 64
        %v1116 = vpop.permute.xlu0 %1115
        %1117 = vrot.lane.b32.xlu0 %v962, 64
        %v1118 = vpop.permute.xlu0 %1117
        %1119 = vrot.lane.b32.xlu0 %v963, 64
        %v1120 = vpop.permute.xlu0 %1119
        %1121 = vrot.lane.b32.xlu0 %v964, 64
        %v1122 = vpop.permute.xlu0 %1121
        %1123 = vrot.lane.b32.xlu0 %v965, 64
        %v1124 = vpop.permute.xlu0 %1123
        %1125 = vrot.lane.b32.xlu0 %v966, 64
        %v1126 = vpop.permute.xlu0 %1125
        %1127 = vrot.lane.b32.xlu0 %v967, 64
        %v1128 = vpop.permute.xlu0 %1127
        %1129 = vrot.lane.b32.xlu0 %v968, 64
        %v1130 = vpop.permute.xlu0 %1129
        %1131 = vrot.lane.b32.xlu0 %v969, 64
        %v1132 = vpop.permute.xlu0 %1131
        %1133 = vrot.lane.b32.xlu0 %v970, 64
        %v1134 = vpop.permute.xlu0 %1133
        %1135 = vrot.lane.b32.xlu0 %v971, 64
        %v1136 = vpop.permute.xlu0 %1135
        %1137 = vrot.lane.b32.xlu0 %v972, 64
        %v1138 = vpop.permute.xlu0 %1137
        %1139 = vrot.lane.b32.xlu0 %v973, 64
        %v1140 = vpop.permute.xlu0 %1139
        %1141 = vrot.lane.b32.xlu0 %v974, 64
        %v1142 = vpop.permute.xlu0 %1141
        %1143 = vrot.lane.b32.xlu0 %v975, 64
        %v1144 = vpop.permute.xlu0 %1143
        %1145 = vrot.lane.b32.xlu0 %v976, 64
        %v1146 = vpop.permute.xlu0 %1145
        %1147 = vrot.lane.b32.xlu0 %v977, 64
        %v1148 = vpop.permute.xlu0 %1147
        %1149 = vrot.lane.b32.xlu0 %v978, 64
        %v1150 = vpop.permute.xlu0 %1149
        %1151 = vrot.lane.b32.xlu0 %v979, 64
        %v1152 = vpop.permute.xlu0 %1151
        %1153 = vrot.lane.b32.xlu0 %v980, 64
        %v1154 = vpop.permute.xlu0 %1153
        %1155 = vrot.lane.b32.xlu0 %v981, 64
        %v1156 = vpop.permute.xlu0 %1155
        %1157 = vrot.lane.b32.xlu0 %v982, 64
        %v1158 = vpop.permute.xlu0 %1157
        %vm1159 = vcmask 523264
        %v1161 = vsel %vm1159, %v627, 0
        %v1164 = vsel %vm1159, %v628, 0
        %v1167 = vsel %vm1159, %v1096, 0
        %v1170 = vsel %vm1159, %v1098, 0
        %v1173 = vsel %vm1159, %v1100, 0
        %v1176 = vsel %vm1159, %v1102, 0
        %v1179 = vsel %vm1159, %v1104, 0
        %v1182 = vsel %vm1159, %v1106, 0
        %v1185 = vsel %vm1159, %v1108, 0
        %v1188 = vsel %vm1159, %v1110, 0
        %v1191 = vsel %vm1159, %v1112, 0
        %v1194 = vsel %vm1159, %v1114, 0
        %v1197 = vsel %vm1159, %v1116, 0
        %v1200 = vsel %vm1159, %v1118, 0
        %v1203 = vsel %vm1159, %v1120, 0
        %v1206 = vsel %vm1159, %v1122, 0
        %v1209 = vsel %vm1159, %v1124, 0
        %v1212 = vsel %vm1159, %v1126, 0
        %v1215 = vsel %vm1159, %v1128, 0
        %v1218 = vsel %vm1159, %v1130, 0
        %v1221 = vsel %vm1159, %v1132, 0
        %v1224 = vsel %vm1159, %v1134, 0
        %v1227 = vsel %vm1159, %v1136, 0
        %v1230 = vsel %vm1159, %v1138, 0
        %v1233 = vsel %vm1159, %v1140, 0
        %v1236 = vsel %vm1159, %v1142, 0
        %v1239 = vsel %vm1159, %v1144, 0
        %v1242 = vsel %vm1159, %v1146, 0
        %v1245 = vsel %vm1159, %v1148, 0
        %v1248 = vsel %vm1159, %v1150, 0
        %v1251 = vsel %vm1159, %v1152, 0
        %v1254 = vsel %vm1159, %v1154, 0
        %v1257 = vsel %vm1159, %v1156, 0
        %v1260 = vsel %vm1159, %v1158, 0
        %1262 = vmatprep.subr.bf16.mxu0 0
        %1263 = vmatpush1.bf16.xpose.msra.mxu0 %v1167
        %1264 = vmatprep.subr.bf16.mxu0 0
        %1265 = vmatpush1.bf16.xpose.msra.mxu0 %v1170
        %1266 = vmatprep.subr.bf16.mxu0 0
        %1267 = vmatpush1.bf16.xpose.msra.mxu0 %v1173
        %1268 = vmatprep.subr.bf16.mxu0 0
        %1269 = vmatpush1.bf16.xpose.msra.mxu0 %v1176
        %1270 = vmatprep.subr.bf16.mxu0 0
        %1271 = vmatpush1.bf16.xpose.msra.mxu0 %v1179
        %1272 = vmatprep.subr.bf16.mxu0 0
        %1273 = vmatpush1.bf16.xpose.msra.mxu0 %v1182
        %1274 = vmatprep.subr.bf16.mxu0 0
        %1275 = vmatpush1.bf16.xpose.msra.mxu0 %v1185
        %1276 = vmatprep.subr.bf16.mxu0 0
        %1277 = vmatpush1.bf16.xpose.msra.mxu0 %v1188
        %1278 = vmatprep.subr.bf16.mxu0 0
        %1279 = vmatpush1.bf16.xpose.msra.mxu0 %v1191
        %1280 = vmatprep.subr.bf16.mxu0 0
        %1281 = vmatpush1.bf16.xpose.msra.mxu0 %v1194
        %1282 = vmatprep.subr.bf16.mxu0 0
        %1283 = vmatpush1.bf16.xpose.msra.mxu0 %v1197
        %1284 = vmatprep.subr.bf16.mxu0 0
        %1285 = vmatpush1.bf16.xpose.msra.mxu0 %v1200
        %1286 = vmatprep.subr.bf16.mxu0 0
        %1287 = vmatpush1.bf16.xpose.msra.mxu0 %v1203
        %1288 = vmatprep.subr.bf16.mxu0 0
        %1289 = vmatpush1.bf16.xpose.msra.mxu0 %v1206
        %1290 = vmatprep.subr.bf16.mxu0 0
        %1291 = vmatpush1.bf16.xpose.msra.mxu0 %v1209
        %1292 = vmatprep.subr.bf16.mxu0 0
        %1293 = vmatpush1.bf16.xpose.msra.mxu0 %v1212
        %1294 = vmatprep.mubr.bf16.mxu0 0
        %1295 = vmatmul.mubr.bf16.gmra.mrb[0].mxu0 %v1161
        %v1296 = vpop.f32.mrb[0].mxu0
        %v1297 = vadd.f32 %v1047, %v1296
        %v1298 = vpop.f32.mrb[0].mxu0
        %v1299 = vadd.f32 %v1048, %v1298
        %v1300 = vpop.f32.mrb[0].mxu0
        %v1301 = vadd.f32 %v1051, %v1300
        %v1302 = vpop.f32.mrb[0].mxu0
        %v1303 = vadd.f32 %v1052, %v1302
        %1304 = vmatprep.mubr.bf16.mxu0 0
        %1305 = vmatmul.mubr.bf16.gmra.mrb[0].mxu0 %v1164
        %v1306 = vpop.f32.mrb[0].mxu0
        %v1307 = vadd.f32 %v1055, %v1306
        %v1308 = vpop.f32.mrb[0].mxu0
        %v1309 = vadd.f32 %v1056, %v1308
        %v1310 = vpop.f32.mrb[0].mxu0
        %v1311 = vadd.f32 %v1059, %v1310
        %v1312 = vpop.f32.mrb[0].mxu0
        %v1313 = vadd.f32 %v1060, %v1312
        %1314 = vdwg.mxu0
        %1315 = vmatprep.subr.bf16.mxu0 0
        %1316 = vmatpush1.bf16.xpose.msra.mxu0 %v1215
        %1317 = vmatprep.subr.bf16.mxu0 0
        %1318 = vmatpush1.bf16.xpose.msra.mxu0 %v1218
        %1319 = vmatprep.subr.bf16.mxu0 0
        %1320 = vmatpush1.bf16.xpose.msra.mxu0 %v1221
        %1321 = vmatprep.subr.bf16.mxu0 0
        %1322 = vmatpush1.bf16.xpose.msra.mxu0 %v1224
        %1323 = vmatprep.subr.bf16.mxu0 0
        %1324 = vmatpush1.bf16.xpose.msra.mxu0 %v1227
        %1325 = vmatprep.subr.bf16.mxu0 0
        %1326 = vmatpush1.bf16.xpose.msra.mxu0 %v1230
        %1327 = vmatprep.subr.bf16.mxu0 0
        %1328 = vmatpush1.bf16.xpose.msra.mxu0 %v1233
        %1329 = vmatprep.subr.bf16.mxu0 0
        %1330 = vmatpush1.bf16.xpose.msra.mxu0 %v1236
        %1331 = vmatprep.subr.bf16.mxu0 0
        %1332 = vmatpush1.bf16.xpose.msra.mxu0 %v1239
        %1333 = vmatprep.subr.bf16.mxu0 0
        %1334 = vmatpush1.bf16.xpose.msra.mxu0 %v1242
        %1335 = vmatprep.subr.bf16.mxu0 0
        %1336 = vmatpush1.bf16.xpose.msra.mxu0 %v1245
        %1337 = vmatprep.subr.bf16.mxu0 0
        %1338 = vmatpush1.bf16.xpose.msra.mxu0 %v1248
        %1339 = vmatprep.subr.bf16.mxu0 0
        %1340 = vmatpush1.bf16.xpose.msra.mxu0 %v1251
        %1341 = vmatprep.subr.bf16.mxu0 0
        %1342 = vmatpush1.bf16.xpose.msra.mxu0 %v1254
        %1343 = vmatprep.subr.bf16.mxu0 0
        %1344 = vmatpush1.bf16.xpose.msra.mxu0 %v1257
        %1345 = vmatprep.subr.bf16.mxu0 0
        %1346 = vmatpush1.bf16.xpose.msra.mxu0 %v1260
        %1347 = vmatprep.mubr.bf16.mxu0 0
        %1348 = vmatmul.mubr.bf16.gmra.mrb[0].mxu0 %v1161
        %v1349 = vpop.f32.mrb[0].mxu0
        %v1350 = vadd.f32 %v1049, %v1349
        %v1351 = vpop.f32.mrb[0].mxu0
        %v1352 = vadd.f32 %v1050, %v1351
        %v1353 = vpop.f32.mrb[0].mxu0
        %v1354 = vadd.f32 %v1053, %v1353
        %v1355 = vpop.f32.mrb[0].mxu0
        %v1356 = vadd.f32 %v1054, %v1355
        %1357 = vmatprep.mubr.bf16.mxu0 0
        %1358 = vmatmul.mubr.bf16.gmra.mrb[0].mxu0 %v1164
        %v1359 = vpop.f32.mrb[0].mxu0
        %v1360 = vadd.f32 %v1057, %v1359
        %v1361 = vpop.f32.mrb[0].mxu0
        %v1362 = vadd.f32 %v1058, %v1361
        %v1363 = vpop.f32.mrb[0].mxu0
        %v1364 = vadd.f32 %v1061, %v1363
        %v1365 = vpop.f32.mrb[0].mxu0
        %v1366 = vadd.f32 %v1062, %v1365
        %1367 = vdwg.mxu0
        %v1368 = vmax.f32 %v1297, %v1299
        %v1369 = vmax.f32 %v1368, %v1350
        %v1370 = vmax.f32 %v1369, %v1352
        %1371 = vmax.xlane.f32.xlu0 %v1370
        %v1372 = vpop.xlane.xlu0 %1371
        %v1373 = vmax.f32 %v1301, %v1303
        %v1374 = vmax.f32 %v1373, %v1354
        %v1375 = vmax.f32 %v1374, %v1356
        %1376 = vmax.xlane.f32.xlu0 %v1375
        %v1377 = vpop.xlane.xlu0 %1376
        %v1378 = vmax.f32 %v1307, %v1309
        %v1379 = vmax.f32 %v1378, %v1360
        %v1380 = vmax.f32 %v1379, %v1362
        %1381 = vmax.xlane.f32.xlu0 %v1380
        %v1382 = vpop.xlane.xlu0 %1381
        %v1383 = vmax.f32 %v1311, %v1313
        %v1384 = vmax.f32 %v1383, %v1364
        %v1385 = vmax.f32 %v1384, %v1366
        %1386 = vmax.xlane.f32.xlu0 %v1385
        %v1387 = vpop.xlane.xlu0 %1386
        %v1388 = vsub.f32 %v1297, %v1372
        %v1389 = vsub.f32 %v1299, %v1372
        %v1390 = vsub.f32 %v1350, %v1372
        %v1391 = vsub.f32 %v1352, %v1372
        %v1392 = vsub.f32 %v1301, %v1377
        %v1393 = vsub.f32 %v1303, %v1377
        %v1394 = vsub.f32 %v1354, %v1377
        %v1395 = vsub.f32 %v1356, %v1377
        %v1396 = vsub.f32 %v1307, %v1382
        %v1397 = vsub.f32 %v1309, %v1382
        %v1398 = vsub.f32 %v1360, %v1382
        %v1399 = vsub.f32 %v1362, %v1382
        %v1400 = vsub.f32 %v1311, %v1387
        %v1401 = vsub.f32 %v1313, %v1387
        %v1402 = vsub.f32 %v1364, %v1387
        %v1403 = vsub.f32 %v1366, %v1387
        %v1404 = vmul.f32 %v1388, 1.442695
        %v1405 = vpow.pop %v1404
        %v1406 = vmul.f32 %v1389, 1.442695
        %v1407 = vpow.pop %v1406
        %v1408 = vmul.f32 %v1390, 1.442695
        %v1409 = vpow.pop %v1408
        %v1410 = vmul.f32 %v1391, 1.442695
        %v1411 = vpow.pop %v1410
        %v1412 = vmul.f32 %v1392, 1.442695
        %v1413 = vpow.pop %v1412
        %v1414 = vmul.f32 %v1393, 1.442695
        %v1415 = vpow.pop %v1414
        %v1416 = vmul.f32 %v1394, 1.442695
        %v1417 = vpow.pop %v1416
        %v1418 = vmul.f32 %v1395, 1.442695
        %v1419 = vpow.pop %v1418
        %v1420 = vmul.f32 %v1396, 1.442695
        %v1421 = vpow.pop %v1420
        %v1422 = vmul.f32 %v1397, 1.442695
        %v1423 = vpow.pop %v1422
        %v1424 = vmul.f32 %v1398, 1.442695
        %v1425 = vpow.pop %v1424
        %v1426 = vmul.f32 %v1399, 1.442695
        %v1427 = vpow.pop %v1426
        %v1428 = vmul.f32 %v1400, 1.442695
        %v1429 = vpow.pop %v1428
        %v1430 = vmul.f32 %v1401, 1.442695
        %v1431 = vpow.pop %v1430
        %v1432 = vmul.f32 %v1402, 1.442695
        %v1433 = vpow.pop %v1432
        %v1434 = vmul.f32 %v1403, 1.442695
        %v1435 = vpow.pop %v1434
        %v1436 = vld [vmem:[%s6] sm:$0xff]
        %v1437 = vld [vmem:[%s6 + $0x8] sm:$0xff]
        %v1438 = vld [vmem:[%s6 + $0x10] sm:$0xff]
        %v1439 = vld [vmem:[%s6 + $0x18] sm:$0xff]
        %v1440 = vld [vmem:[%s6 + $0x20] sm:$0xff]
        %v1441 = vld [vmem:[%s6 + $0x28] sm:$0xff]
        %v1442 = vld [vmem:[%s6 + $0x30] sm:$0xff]
        %v1443 = vld [vmem:[%s6 + $0x38] sm:$0xff]
        %v1444 = vld [vmem:[%s6 + $0x40] sm:$0xff]
        %v1445 = vld [vmem:[%s6 + $0x48] sm:$0xff]
        %v1446 = vld [vmem:[%s6 + $0x50] sm:$0xff]
        %v1447 = vld [vmem:[%s6 + $0x58] sm:$0xff]
        %v1448 = vld [vmem:[%s6 + $0x60] sm:$0xff]
        %v1449 = vld [vmem:[%s6 + $0x68] sm:$0xff]
        %v1450 = vld [vmem:[%s6 + $0x70] sm:$0xff]
        %v1451 = vld [vmem:[%s6 + $0x78] sm:$0xff]
        %v1452 = vld [vmem:[%s6 + $0x80] sm:$0xff]
        %v1453 = vld [vmem:[%s6 + $0x88] sm:$0xff]
        %v1454 = vld [vmem:[%s6 + $0x90] sm:$0xff]
        %v1455 = vld [vmem:[%s6 + $0x98] sm:$0xff]
        %v1456 = vld [vmem:[%s6 + $0xa0] sm:$0xff]
        %v1457 = vld [vmem:[%s6 + $0xa8] sm:$0xff]
        %v1458 = vld [vmem:[%s6 + $0xb0] sm:$0xff]
        %v1459 = vld [vmem:[%s6 + $0xb8] sm:$0xff]
        %v1460 = vld [vmem:[%s6 + $0xc0] sm:$0xff]
        %v1461 = vld [vmem:[%s6 + $0xc8] sm:$0xff]
        %v1462 = vld [vmem:[%s6 + $0xd0] sm:$0xff]
        %v1463 = vld [vmem:[%s6 + $0xd8] sm:$0xff]
        %v1464 = vld [vmem:[%s6 + $0xe0] sm:$0xff]
        %v1465 = vld [vmem:[%s6 + $0xe8] sm:$0xff]
        %v1466 = vld [vmem:[%s6 + $0xf0] sm:$0xff]
        %v1467 = vld [vmem:[%s6 + $0xf8] sm:$0xff]
        %v1468 = vld [vmem:[%s6 + $0x100] sm:$0xff]
        %v1469 = vld [vmem:[%s6 + $0x108] sm:$0xff]
        %v1470 = vld [vmem:[%s6 + $0x110] sm:$0xff]
        %v1471 = vld [vmem:[%s6 + $0x118] sm:$0xff]
        %v1472 = vld [vmem:[%s6 + $0x120] sm:$0xff]
        %v1473 = vld [vmem:[%s6 + $0x128] sm:$0xff]
        %v1474 = vld [vmem:[%s6 + $0x130] sm:$0xff]
        %v1475 = vld [vmem:[%s6 + $0x138] sm:$0xff]
        %v1476 = vld [vmem:[%s6 + $0x140] sm:$0xff]
        %v1477 = vld [vmem:[%s6 + $0x148] sm:$0xff]
        %v1478 = vld [vmem:[%s6 + $0x150] sm:$0xff]
        %v1479 = vld [vmem:[%s6 + $0x158] sm:$0xff]
        %v1480 = vld [vmem:[%s6 + $0x160] sm:$0xff]
        %v1481 = vld [vmem:[%s6 + $0x168] sm:$0xff]
        %v1482 = vld [vmem:[%s6 + $0x170] sm:$0xff]
        %v1483 = vld [vmem:[%s6 + $0x178] sm:$0xff]
        %v1484 = vld [vmem:[%s6 + $0x180] sm:$0xff]
        %v1485 = vld [vmem:[%s6 + $0x188] sm:$0xff]
        %v1486 = vld [vmem:[%s6 + $0x190] sm:$0xff]
        %v1487 = vld [vmem:[%s6 + $0x198] sm:$0xff]
        %v1488 = vld [vmem:[%s6 + $0x1a0] sm:$0xff]
        %v1489 = vld [vmem:[%s6 + $0x1a8] sm:$0xff]
        %v1490 = vld [vmem:[%s6 + $0x1b0] sm:$0xff]
        %v1491 = vld [vmem:[%s6 + $0x1b8] sm:$0xff]
        %v1492 = vld [vmem:[%s6 + $0x1c0] sm:$0xff]
        %v1493 = vld [vmem:[%s6 + $0x1c8] sm:$0xff]
        %v1494 = vld [vmem:[%s6 + $0x1d0] sm:$0xff]
        %v1495 = vld [vmem:[%s6 + $0x1d8] sm:$0xff]
        %v1496 = vld [vmem:[%s6 + $0x1e0] sm:$0xff]
        %v1497 = vld [vmem:[%s6 + $0x1e8] sm:$0xff]
        %v1498 = vld [vmem:[%s6 + $0x1f0] sm:$0xff]
        %v1499 = vld [vmem:[%s6 + $0x1f8] sm:$0xff]
        %1500 = vmatprep.subr.mxu0 0.0
        %1501 = vmatpush1.msra.mxu0 %v1436
        %1502 = vmatprep.subr.mxu0 0.0
        %1503 = vmatpush1.msra.mxu0 %v1437
        %1504 = vmatprep.subr.mxu0 0.0
        %1505 = vmatpush1.msra.mxu0 %v1438
        %1506 = vmatprep.subr.mxu0 0.0
        %1507 = vmatpush1.msra.mxu0 %v1439
        %1508 = vmatprep.subr.mxu0 0.0
        %1509 = vmatpush1.msra.mxu0 %v1440
        %1510 = vmatprep.subr.mxu0 0.0
        %1511 = vmatpush1.msra.mxu0 %v1441
        %1512 = vmatprep.subr.mxu0 0.0
        %1513 = vmatpush1.msra.mxu0 %v1442
        %1514 = vmatprep.subr.mxu0 0.0
        %1515 = vmatpush1.msra.mxu0 %v1443
        %1516 = vmatprep.subr.mxu0 0.0
        %1517 = vmatpush1.msra.mxu0 %v1444
        %1518 = vmatprep.subr.mxu0 0.0
        %1519 = vmatpush1.msra.mxu0 %v1445
        %1520 = vmatprep.subr.mxu0 0.0
        %1521 = vmatpush1.msra.mxu0 %v1446
        %1522 = vmatprep.subr.mxu0 0.0
        %1523 = vmatpush1.msra.mxu0 %v1447
        %1524 = vmatprep.subr.mxu0 0.0
        %1525 = vmatpush1.msra.mxu0 %v1448
        %1526 = vmatprep.subr.mxu0 0.0
        %1527 = vmatpush1.msra.mxu0 %v1449
        %1528 = vmatprep.subr.mxu0 0.0
        %1529 = vmatpush1.msra.mxu0 %v1450
        %1530 = vmatprep.subr.mxu0 0.0
        %1531 = vmatpush1.msra.mxu0 %v1451
        %1532 = vmatprep.subr.mxu0 0.0
        %1533 = vmatpush1.msra.mxu0 %v1452
        %1534 = vmatprep.subr.mxu0 0.0
        %1535 = vmatpush1.msra.mxu0 %v1453
        %1536 = vmatprep.subr.mxu0 0.0
        %1537 = vmatpush1.msra.mxu0 %v1454
        %1538 = vmatprep.subr.mxu0 0.0
        %1539 = vmatpush1.msra.mxu0 %v1455
        %1540 = vmatprep.subr.mxu0 0.0
        %1541 = vmatpush1.msra.mxu0 %v1456
        %1542 = vmatprep.subr.mxu0 0.0
        %1543 = vmatpush1.msra.mxu0 %v1457
        %1544 = vmatprep.subr.mxu0 0.0
        %1545 = vmatpush1.msra.mxu0 %v1458
        %1546 = vmatprep.subr.mxu0 0.0
        %1547 = vmatpush1.msra.mxu0 %v1459
        %1548 = vmatprep.subr.mxu0 0.0
        %1549 = vmatpush1.msra.mxu0 %v1460
        %1550 = vmatprep.subr.mxu0 0.0
        %1551 = vmatpush1.msra.mxu0 %v1461
        %1552 = vmatprep.subr.mxu0 0.0
        %1553 = vmatpush1.msra.mxu0 %v1462
        %1554 = vmatprep.subr.mxu0 0.0
        %1555 = vmatpush1.msra.mxu0 %v1463
        %1556 = vmatprep.subr.mxu0 0.0
        %1557 = vmatpush1.msra.mxu0 %v1464
        %1558 = vmatprep.subr.mxu0 0.0
        %1559 = vmatpush1.msra.mxu0 %v1465
        %1560 = vmatprep.subr.mxu0 0.0
        %1561 = vmatpush1.msra.mxu0 %v1466
        %1562 = vmatprep.subr.mxu0 0.0
        %1563 = vmatpush1.msra.mxu0 %v1467
        %1564 = vmatprep.mubr.f32.mxu0 %v1407
        %1565 = vmatmul.mubr.f32.gmra.mrb[0].mxu0 %v1405
        %v1566 = vpop.f32.mrb[0].mxu0
        %v1567 = vadd.f32 0.0, %v1566
        %v1568 = vpop.f32.mrb[0].mxu0
        %1569 = vmatprep.mubr.f32.mxu0 %v1415
        %1570 = vmatmul.mubr.f32.gmra.mrb[0].mxu0 %v1413
        %v1571 = vpop.f32.mrb[0].mxu0
        %v1572 = vadd.f32 0.0, %v1571
        %v1573 = vpop.f32.mrb[0].mxu0
        %1574 = vmatprep.mubr.f32.mxu0 %v1423
        %1575 = vmatmul.mubr.f32.gmra.mrb[0].mxu0 %v1421
        %v1576 = vpop.f32.mrb[0].mxu0
        %v1577 = vadd.f32 0.0, %v1576
        %v1578 = vpop.f32.mrb[0].mxu0
        %1579 = vmatprep.mubr.f32.mxu0 %v1431
        %1580 = vmatmul.mubr.f32.gmra.mrb[0].mxu0 %v1429
        %v1581 = vpop.f32.mrb[0].mxu0
        %v1582 = vadd.f32 0.0, %v1581
        %v1583 = vpop.f32.mrb[0].mxu0
        %1584 = vdwg.mxu0
        %1585 = vmatprep.subr.mxu0 0.0
        %1586 = vmatpush1.msra.mxu0 %v1468
        %1587 = vmatprep.subr.mxu0 0.0
        %1588 = vmatpush1.msra.mxu0 %v1469
        %1589 = vmatprep.subr.mxu0 0.0
        %1590 = vmatpush1.msra.mxu0 %v1470
        %1591 = vmatprep.subr.mxu0 0.0
        %1592 = vmatpush1.msra.mxu0 %v1471
        %1593 = vmatprep.subr.mxu0 0.0
        %1594 = vmatpush1.msra.mxu0 %v1472
        %1595 = vmatprep.subr.mxu0 0.0
        %1596 = vmatpush1.msra.mxu0 %v1473
        %1597 = vmatprep.subr.mxu0 0.0
        %1598 = vmatpush1.msra.mxu0 %v1474
        %1599 = vmatprep.subr.mxu0 0.0
        %1600 = vmatpush1.msra.mxu0 %v1475
        %1601 = vmatprep.subr.mxu0 0.0
        %1602 = vmatpush1.msra.mxu0 %v1476
        %1603 = vmatprep.subr.mxu0 0.0
        %1604 = vmatpush1.msra.mxu0 %v1477
        %1605 = vmatprep.subr.mxu0 0.0
        %1606 = vmatpush1.msra.mxu0 %v1478
        %1607 = vmatprep.subr.mxu0 0.0
        %1608 = vmatpush1.msra.mxu0 %v1479
        %1609 = vmatprep.subr.mxu0 0.0
        %1610 = vmatpush1.msra.mxu0 %v1480
        %1611 = vmatprep.subr.mxu0 0.0
        %1612 = vmatpush1.msra.mxu0 %v1481
        %1613 = vmatprep.subr.mxu0 0.0
        %1614 = vmatpush1.msra.mxu0 %v1482
        %1615 = vmatprep.subr.mxu0 0.0
        %1616 = vmatpush1.msra.mxu0 %v1483
        %1617 = vmatprep.subr.mxu0 0.0
        %1618 = vmatpush1.msra.mxu0 %v1484
        %1619 = vmatprep.subr.mxu0 0.0
        %1620 = vmatpush1.msra.mxu0 %v1485
        %1621 = vmatprep.subr.mxu0 0.0
        %1622 = vmatpush1.msra.mxu0 %v1486
        %1623 = vmatprep.subr.mxu0 0.0
        %1624 = vmatpush1.msra.mxu0 %v1487
        %1625 = vmatprep.subr.mxu0 0.0
        %1626 = vmatpush1.msra.mxu0 %v1488
        %1627 = vmatprep.subr.mxu0 0.0
        %1628 = vmatpush1.msra.mxu0 %v1489
        %1629 = vmatprep.subr.mxu0 0.0
        %1630 = vmatpush1.msra.mxu0 %v1490
        %1631 = vmatprep.subr.mxu0 0.0
        %1632 = vmatpush1.msra.mxu0 %v1491
        %1633 = vmatprep.subr.mxu0 0.0
        %1634 = vmatpush1.msra.mxu0 %v1492
        %1635 = vmatprep.subr.mxu0 0.0
        %1636 = vmatpush1.msra.mxu0 %v1493
        %1637 = vmatprep.subr.mxu0 0.0
        %1638 = vmatpush1.msra.mxu0 %v1494
        %1639 = vmatprep.subr.mxu0 0.0
        %1640 = vmatpush1.msra.mxu0 %v1495
        %1641 = vmatprep.subr.mxu0 0.0
        %1642 = vmatpush1.msra.mxu0 %v1496
        %1643 = vmatprep.subr.mxu0 0.0
        %1644 = vmatpush1.msra.mxu0 %v1497
        %1645 = vmatprep.subr.mxu0 0.0
        %1646 = vmatpush1.msra.mxu0 %v1498
        %1647 = vmatprep.subr.mxu0 0.0
        %1648 = vmatpush1.msra.mxu0 %v1499
        %1649 = vmatprep.mubr.f32.mxu0 %v1411
        %1650 = vmatmul.mubr.f32.gmra.mrb[0].mxu0 %v1409
        %v1651 = vpop.f32.mrb[0].mxu0
        %v1652 = vadd.f32 %v1567, %v1651
        %v1653 = vpop.f32.mrb[0].mxu0
        %1654 = vmatprep.mubr.f32.mxu0 %v1419
        %1655 = vmatmul.mubr.f32.gmra.mrb[0].mxu0 %v1417
        %v1656 = vpop.f32.mrb[0].mxu0
        %v1657 = vadd.f32 %v1572, %v1656
        %v1658 = vpop.f32.mrb[0].mxu0
        %1659 = vmatprep.mubr.f32.mxu0 %v1427
        %1660 = vmatmul.mubr.f32.gmra.mrb[0].mxu0 %v1425
        %v1661 = vpop.f32.mrb[0].mxu0
        %v1662 = vadd.f32 %v1577, %v1661
        %v1663 = vpop.f32.mrb[0].mxu0
        %1664 = vmatprep.mubr.f32.mxu0 %v1435
        %1665 = vmatmul.mubr.f32.gmra.mrb[0].mxu0 %v1433
        %v1666 = vpop.f32.mrb[0].mxu0
        %v1667 = vadd.f32 %v1582, %v1666
        %v1668 = vpop.f32.mrb[0].mxu0
        %1669 = vdwg.mxu0
        %v1670 = vmax.f32 %v1652, 1e-30
        %v1671 = vmax.f32 %v1657, 1e-30
        %v1672 = vmax.f32 %v1662, 1e-30
        %v1673 = vmax.f32 %v1667, 1e-30
        %v1674 = vrcp.pop %v1670
        %v1675 = vrcp.pop %v1671
        %v1676 = vrcp.pop %v1672
        %v1677 = vrcp.pop %v1673
        %v1678 = vld [vmem:[%s7] sm:$0xff]
        %v1679 = vld [vmem:[%s7 + $0x8] sm:$0xff]
        %vm1680 = vcmask 130048
        %v1682 = vsel %vm1680, %v1674, 0
        %v1685 = vsel %vm1680, %v1675, 0
        %v1688 = vsel %vm1680, %v1676, 0
        %v1691 = vsel %vm1680, %v1677, 0
        %1693 = vmatprep.subr.mxu0 0.0
        %1694 = vmatpush1.msra.mxu0 %v1678
        %1695 = vmatprep.subr.mxu0 0.0
        %1696 = vmatpush1.msra.mxu0 %v1679
        %1697 = vmatprep.subr.mxu0 0.0
        %1698 = vmatpush1.msra.mxu0 0.0
        %1699 = vmatprep.subr.mxu0 0.0
        %1700 = vmatpush1.msra.mxu0 0.0
        %1701 = vmatprep.subr.mxu0 0.0
        %1702 = vmatpush1.msra.mxu0 0.0
        %1703 = vmatprep.subr.mxu0 0.0
        %1704 = vmatpush1.msra.mxu0 0.0
        %1705 = vmatprep.subr.mxu0 0.0
        %1706 = vmatpush1.msra.mxu0 0.0
        %1707 = vmatprep.subr.mxu0 0.0
        %1708 = vmatpush1.msra.mxu0 0.0
        %1709 = vmatprep.subr.mxu0 0.0
        %1710 = vmatpush1.msra.mxu0 0.0
        %1711 = vmatprep.subr.mxu0 0.0
        %1712 = vmatpush1.msra.mxu0 0.0
        %1713 = vmatprep.subr.mxu0 0.0
        %1714 = vmatpush1.msra.mxu0 0.0
        %1715 = vmatprep.subr.mxu0 0.0
        %1716 = vmatpush1.msra.mxu0 0.0
        %1717 = vmatprep.subr.mxu0 0.0
        %1718 = vmatpush1.msra.mxu0 0.0
        %1719 = vmatprep.subr.mxu0 0.0
        %1720 = vmatpush1.msra.mxu0 0.0
        %1721 = vmatprep.subr.mxu0 0.0
        %1722 = vmatpush1.msra.mxu0 0.0
        %1723 = vmatprep.subr.mxu0 0.0
        %1724 = vmatpush1.msra.mxu0 0.0
        %1725 = vmatprep.subr.mxu0 0.0
        %1726 = vmatpush1.msra.mxu0 0.0
        %1727 = vmatprep.subr.mxu0 0.0
        %1728 = vmatpush1.msra.mxu0 0.0
        %1729 = vmatprep.subr.mxu0 0.0
        %1730 = vmatpush1.msra.mxu0 0.0
        %1731 = vmatprep.subr.mxu0 0.0
        %1732 = vmatpush1.msra.mxu0 0.0
        %1733 = vmatprep.subr.mxu0 0.0
        %1734 = vmatpush1.msra.mxu0 0.0
        %1735 = vmatprep.subr.mxu0 0.0
        %1736 = vmatpush1.msra.mxu0 0.0
        %1737 = vmatprep.subr.mxu0 0.0
        %1738 = vmatpush1.msra.mxu0 0.0
        %1739 = vmatprep.subr.mxu0 0.0
        %1740 = vmatpush1.msra.mxu0 0.0
        %1741 = vmatprep.subr.mxu0 0.0
        %1742 = vmatpush1.msra.mxu0 0.0
        %1743 = vmatprep.subr.mxu0 0.0
        %1744 = vmatpush1.msra.mxu0 0.0
        %1745 = vmatprep.subr.mxu0 0.0
        %1746 = vmatpush1.msra.mxu0 0.0
        %1747 = vmatprep.subr.mxu0 0.0
        %1748 = vmatpush1.msra.mxu0 0.0
        %1749 = vmatprep.subr.mxu0 0.0
        %1750 = vmatpush1.msra.mxu0 0.0
        %1751 = vmatprep.subr.mxu0 0.0
        %1752 = vmatpush1.msra.mxu0 0.0
        %1753 = vmatprep.subr.mxu0 0.0
        %1754 = vmatpush1.msra.mxu0 0.0
        %1755 = vmatprep.subr.mxu0 0.0
        %1756 = vmatpush1.msra.mxu0 0.0
        %1757 = vmatprep.mubr.f32.mxu0 0.0
        %1758 = vmatmul.mubr.f32.gmra.mrb[0].mxu0 %v1682
        %v1759 = vpop.f32.mrb[0].mxu0
        %v1760 = vadd.f32 0.0, %v1759
        %v1761 = vpop.f32.mrb[0].mxu0
        %1762 = vmatprep.mubr.f32.mxu0 0.0
        %1763 = vmatmul.mubr.f32.gmra.mrb[0].mxu0 %v1685
        %v1764 = vpop.f32.mrb[0].mxu0
        %v1765 = vadd.f32 0.0, %v1764
        %v1766 = vpop.f32.mrb[0].mxu0
        %1767 = vmatprep.mubr.f32.mxu0 0.0
        %1768 = vmatmul.mubr.f32.gmra.mrb[0].mxu0 %v1688
        %v1769 = vpop.f32.mrb[0].mxu0
        %v1770 = vadd.f32 0.0, %v1769
        %v1771 = vpop.f32.mrb[0].mxu0
        %1772 = vmatprep.mubr.f32.mxu0 0.0
        %1773 = vmatmul.mubr.f32.gmra.mrb[0].mxu0 %v1691
        %v1774 = vpop.f32.mrb[0].mxu0
        %v1775 = vadd.f32 0.0, %v1774
        %v1776 = vpop.f32.mrb[0].mxu0
        %1777 = vdwg.mxu0
        %v1778 = vpack.c.bf16 %v1413, %v1405
        %v1779 = vpack.c.bf16 %v1415, %v1407
        %v1780 = vpack.c.bf16 %v1417, %v1409
        %v1781 = vpack.c.bf16 %v1419, %v1411
        %v1782 = vpack.c.bf16 %v1429, %v1421
        %v1783 = vpack.c.bf16 %v1431, %v1423
        %v1784 = vpack.c.bf16 %v1433, %v1425
        %v1785 = vpack.c.bf16 %v1435, %v1427
        %1786 = vmatprep.subr.bf16.mxu0 0
        %1787 = vmatpush1.bf16.msra.mxu0 %v1015
        %1788 = vmatprep.subr.bf16.mxu0 0
        %1789 = vmatpush1.bf16.msra.mxu0 %v1016
        %1790 = vmatprep.subr.bf16.mxu0 0
        %1791 = vmatpush1.bf16.msra.mxu0 %v1017
        %1792 = vmatprep.subr.bf16.mxu0 0
        %1793 = vmatpush1.bf16.msra.mxu0 %v1018
        %1794 = vmatprep.subr.bf16.mxu0 0
        %1795 = vmatpush1.bf16.msra.mxu0 %v1019
        %1796 = vmatprep.subr.bf16.mxu0 0
        %1797 = vmatpush1.bf16.msra.mxu0 %v1020
        %1798 = vmatprep.subr.bf16.mxu0 0
        %1799 = vmatpush1.bf16.msra.mxu0 %v1021
        %1800 = vmatprep.subr.bf16.mxu0 0
        %1801 = vmatpush1.bf16.msra.mxu0 %v1022
        %1802 = vmatprep.subr.bf16.mxu0 0
        %1803 = vmatpush1.bf16.msra.mxu0 %v1023
        %1804 = vmatprep.subr.bf16.mxu0 0
        %1805 = vmatpush1.bf16.msra.mxu0 %v1024
        %1806 = vmatprep.subr.bf16.mxu0 0
        %1807 = vmatpush1.bf16.msra.mxu0 %v1025
        %1808 = vmatprep.subr.bf16.mxu0 0
        %1809 = vmatpush1.bf16.msra.mxu0 %v1026
        %1810 = vmatprep.subr.bf16.mxu0 0
        %1811 = vmatpush1.bf16.msra.mxu0 %v1027
        %1812 = vmatprep.subr.bf16.mxu0 0
        %1813 = vmatpush1.bf16.msra.mxu0 %v1028
        %1814 = vmatprep.subr.bf16.mxu0 0
        %1815 = vmatpush1.bf16.msra.mxu0 %v1029
        %1816 = vmatprep.subr.bf16.mxu0 0
        %1817 = vmatpush1.bf16.msra.mxu0 %v1030
        %1818 = vmatprep.mubr.bf16.mxu0 %v1779
        %1819 = vmatmul.mubr.bf16.gmra.mrb[0].mxu0 %v1778
        %v1820 = vpop.f32.mrb[0].mxu0
        %v1821 = vadd.f32 0.0, %v1820
        %v1822 = vpop.f32.mrb[0].mxu0
        %v1823 = vpop.f32.mrb[0].mxu0
        %v1824 = vadd.f32 0.0, %v1823
        %v1825 = vpop.f32.mrb[0].mxu0
        %1826 = vmatprep.mubr.bf16.mxu0 %v1783
        %1827 = vmatmul.mubr.bf16.gmra.mrb[0].mxu0 %v1782
        %v1828 = vpop.f32.mrb[0].mxu0
        %v1829 = vadd.f32 0.0, %v1828
        %v1830 = vpop.f32.mrb[0].mxu0
        %v1831 = vpop.f32.mrb[0].mxu0
        %v1832 = vadd.f32 0.0, %v1831
        %v1833 = vpop.f32.mrb[0].mxu0
        %1834 = vdwg.mxu0
        %1835 = vmatprep.subr.bf16.mxu0 0
        %1836 = vmatpush1.bf16.msra.mxu0 %v1031
        %1837 = vmatprep.subr.bf16.mxu0 0
        %1838 = vmatpush1.bf16.msra.mxu0 %v1032
        %1839 = vmatprep.subr.bf16.mxu0 0
        %1840 = vmatpush1.bf16.msra.mxu0 %v1033
        %1841 = vmatprep.subr.bf16.mxu0 0
        %1842 = vmatpush1.bf16.msra.mxu0 %v1034
        %1843 = vmatprep.subr.bf16.mxu0 0
        %1844 = vmatpush1.bf16.msra.mxu0 %v1035
        %1845 = vmatprep.subr.bf16.mxu0 0
        %1846 = vmatpush1.bf16.msra.mxu0 %v1036
        %1847 = vmatprep.subr.bf16.mxu0 0
        %1848 = vmatpush1.bf16.msra.mxu0 %v1037
        %1849 = vmatprep.subr.bf16.mxu0 0
        %1850 = vmatpush1.bf16.msra.mxu0 %v1038
        %1851 = vmatprep.subr.bf16.mxu0 0
        %1852 = vmatpush1.bf16.msra.mxu0 %v1039
        %1853 = vmatprep.subr.bf16.mxu0 0
        %1854 = vmatpush1.bf16.msra.mxu0 %v1040
        %1855 = vmatprep.subr.bf16.mxu0 0
        %1856 = vmatpush1.bf16.msra.mxu0 %v1041
        %1857 = vmatprep.subr.bf16.mxu0 0
        %1858 = vmatpush1.bf16.msra.mxu0 %v1042
        %1859 = vmatprep.subr.bf16.mxu0 0
        %1860 = vmatpush1.bf16.msra.mxu0 %v1043
        %1861 = vmatprep.subr.bf16.mxu0 0
        %1862 = vmatpush1.bf16.msra.mxu0 %v1044
        %1863 = vmatprep.subr.bf16.mxu0 0
        %1864 = vmatpush1.bf16.msra.mxu0 %v1045
        %1865 = vmatprep.subr.bf16.mxu0 0
        %1866 = vmatpush1.bf16.msra.mxu0 %v1046
        %1867 = vmatprep.mubr.bf16.mxu0 %v1781
        %1868 = vmatmul.mubr.bf16.gmra.mrb[0].mxu0 %v1780
        %v1869 = vpop.f32.mrb[0].mxu0
        %v1870 = vadd.f32 %v1821, %v1869
        %v1871 = vpop.f32.mrb[0].mxu0
        %v1872 = vpop.f32.mrb[0].mxu0
        %v1873 = vadd.f32 %v1824, %v1872
        %v1874 = vpop.f32.mrb[0].mxu0
        %1875 = vmatprep.mubr.bf16.mxu0 %v1785
        %1876 = vmatmul.mubr.bf16.gmra.mrb[0].mxu0 %v1784
        %v1877 = vpop.f32.mrb[0].mxu0
        %v1878 = vadd.f32 %v1829, %v1877
        %v1879 = vpop.f32.mrb[0].mxu0
        %v1880 = vpop.f32.mrb[0].mxu0
        %v1881 = vadd.f32 %v1832, %v1880
        %v1882 = vpop.f32.mrb[0].mxu0
        %1883 = vdwg.mxu0
        %v1884 = vmul.f32 %v1870, %v1760
        %v1885 = vmul.f32 %v1873, %v1765
        %v1886 = vmul.f32 %v1878, %v1770
        %v1887 = vmul.f32 %v1881, %v1775
        %v1888 = vpack.c.bf16 %v1885, %v1884
        %v1889 = vpack.c.bf16 %v1887, %v1886
        %v1890 = vld [vmem:[%s8] sm:$0xf]
        %v1891 = vld [vmem:[%s8 + $0x4] sm:$0xf]
        %v1892 = vld [vmem:[%s8 + $0x8] sm:$0xf]
        %v1893 = vld [vmem:[%s8 + $0xc] sm:$0xf]
        %v1894 = vld [vmem:[%s8 + $0x10] sm:$0xf]
        %v1895 = vld [vmem:[%s8 + $0x14] sm:$0xf]
        %v1896 = vld [vmem:[%s8 + $0x18] sm:$0xf]
        %v1897 = vld [vmem:[%s8 + $0x1c] sm:$0xf]
        %v1906 = vunpack.c.l.b16 %v1890
        %v1907 = vunpack.c.l.b16 %v1891
        %v1908 = vunpack.c.l.b16 %v1892
        %v1909 = vunpack.c.l.b16 %v1893
        %v1910 = vunpack.c.l.b16 %v1894
        %v1911 = vunpack.c.l.b16 %v1895
        %v1912 = vunpack.c.l.b16 %v1896
        %v1913 = vunpack.c.l.b16 %v1897
        %v1914 = vpack.c.b16 %v1907, %v1906
        %v1915 = vpack.c.b16 %v1909, %v1908
        %v1916 = vpack.c.b16 %v1911, %v1910
        %v1917 = vpack.c.b16 %v1913, %v1912
        %v1923 = vsel %vm1159, %v1888, 0
        %v1926 = vsel %vm1159, %v1889, 0
        %1928 = vmatprep.subr.bf16.mxu0 0
        %1929 = vmatpush1.bf16.msra.mxu0 %v1914
        %1930 = vmatprep.subr.bf16.mxu0 0
        %1931 = vmatpush1.bf16.msra.mxu0 %v1915
        %1932 = vmatprep.subr.bf16.mxu0 0
        %1933 = vmatpush1.bf16.msra.mxu0 %v1916
        %1934 = vmatprep.subr.bf16.mxu0 0
        %1935 = vmatpush1.bf16.msra.mxu0 %v1917
        %1936 = vmatprep.subr.bf16.mxu0 0
        %1937 = vmatpush1.bf16.msra.mxu0 0
        %1938 = vmatprep.subr.bf16.mxu0 0
        %1939 = vmatpush1.bf16.msra.mxu0 0
        %1940 = vmatprep.subr.bf16.mxu0 0
        %1941 = vmatpush1.bf16.msra.mxu0 0
        %1942 = vmatprep.subr.bf16.mxu0 0
        %1943 = vmatpush1.bf16.msra.mxu0 0
        %1944 = vmatprep.subr.bf16.mxu0 0
        %1945 = vmatpush1.bf16.msra.mxu0 0
        %1946 = vmatprep.subr.bf16.mxu0 0
        %1947 = vmatpush1.bf16.msra.mxu0 0
        %1948 = vmatprep.subr.bf16.mxu0 0
        %1949 = vmatpush1.bf16.msra.mxu0 0
        %1950 = vmatprep.subr.bf16.mxu0 0
        %1951 = vmatpush1.bf16.msra.mxu0 0
        %1952 = vmatprep.subr.bf16.mxu0 0
        %1953 = vmatpush1.bf16.msra.mxu0 0
        %1954 = vmatprep.subr.bf16.mxu0 0
        %1955 = vmatpush1.bf16.msra.mxu0 0
        %1956 = vmatprep.subr.bf16.mxu0 0
        %1957 = vmatpush1.bf16.msra.mxu0 0
        %1958 = vmatprep.subr.bf16.mxu0 0
        %1959 = vmatpush1.bf16.msra.mxu0 0
        %1960 = vmatprep.mubr.bf16.mxu0 0
        %1961 = vmatmul.mubr.bf16.gmra.mrb[0].mxu0 %v1923
        %v1962 = vpop.f32.mrb[0].mxu0
        %v1963 = vadd.f32 0.0, %v1962
        %v1964 = vpop.f32.mrb[0].mxu0
        %v1965 = vpop.f32.mrb[0].mxu0
        %v1966 = vadd.f32 0.0, %v1965
        %v1967 = vpop.f32.mrb[0].mxu0
        %1968 = vmatprep.mubr.bf16.mxu0 0
        %1969 = vmatmul.mubr.bf16.gmra.mrb[0].mxu0 %v1926
        %v1970 = vpop.f32.mrb[0].mxu0
        %v1971 = vadd.f32 0.0, %v1970
        %v1972 = vpop.f32.mrb[0].mxu0
        %v1973 = vpop.f32.mrb[0].mxu0
        %v1974 = vadd.f32 0.0, %v1973
        %v1975 = vpop.f32.mrb[0].mxu0
        %1976 = vdwg.mxu0
        %v1977 = vunpack.c.l.bf16 %v460
        %v1978 = vunpack.c.l.bf16 %v461
        %v1979 = vunpack.c.l.bf16 %v462
        %v1980 = vunpack.c.l.bf16 %v463
        %v1981 = vmul.f32 %v1963, %v1977
        %v1982 = vmul.f32 %v1966, %v1978
        %v1983 = vmul.f32 %v1971, %v1979
        %v1984 = vmul.f32 %v1974, %v1980
        %v1985 = vld [vmem:[%s9] sm:$0xff]
        %v1986 = vld [vmem:[%s10] sm:$0x1]
        %v1988 = vlaneseq
        %v1989 = vshrl.u32 %v1988, 7
        %v1990 = vsub.s32 0, %v1989
        %v1991 = vrot.slane %v1986, %v1990
        %vm1993 = vcmask 261120
        %v1995 = vsel %vm1993, %v1985, 0
        %1997 = vmatprep.subr.mxu0 0.0
        %1998 = vmatpush1.msra.mxu0 %v1981
        %1999 = vmatprep.subr.mxu0 0.0
        %2000 = vmatpush1.msra.mxu0 %v1982
        %2001 = vmatprep.subr.mxu0 0.0
        %2002 = vmatpush1.msra.mxu0 %v1983
        %2003 = vmatprep.subr.mxu0 0.0
        %2004 = vmatpush1.msra.mxu0 %v1984
        %2005 = vmatprep.subr.mxu0 0.0
        %2006 = vmatpush1.msra.mxu0 0.0
        %2007 = vmatprep.subr.mxu0 0.0
        %2008 = vmatpush1.msra.mxu0 0.0
        %2009 = vmatprep.subr.mxu0 0.0
        %2010 = vmatpush1.msra.mxu0 0.0
        %2011 = vmatprep.subr.mxu0 0.0
        %2012 = vmatpush1.msra.mxu0 0.0
        %2013 = vmatprep.subr.mxu0 0.0
        %2014 = vmatpush1.msra.mxu0 0.0
        %2015 = vmatprep.subr.mxu0 0.0
        %2016 = vmatpush1.msra.mxu0 0.0
        %2017 = vmatprep.subr.mxu0 0.0
        %2018 = vmatpush1.msra.mxu0 0.0
        %2019 = vmatprep.subr.mxu0 0.0
        %2020 = vmatpush1.msra.mxu0 0.0
        %2021 = vmatprep.subr.mxu0 0.0
        %2022 = vmatpush1.msra.mxu0 0.0
        %2023 = vmatprep.subr.mxu0 0.0
        %2024 = vmatpush1.msra.mxu0 0.0
        %2025 = vmatprep.subr.mxu0 0.0
        %2026 = vmatpush1.msra.mxu0 0.0
        %2027 = vmatprep.subr.mxu0 0.0
        %2028 = vmatpush1.msra.mxu0 0.0
        %2029 = vmatprep.subr.mxu0 0.0
        %2030 = vmatpush1.msra.mxu0 0.0
        %2031 = vmatprep.subr.mxu0 0.0
        %2032 = vmatpush1.msra.mxu0 0.0
        %2033 = vmatprep.subr.mxu0 0.0
        %2034 = vmatpush1.msra.mxu0 0.0
        %2035 = vmatprep.subr.mxu0 0.0
        %2036 = vmatpush1.msra.mxu0 0.0
        %2037 = vmatprep.subr.mxu0 0.0
        %2038 = vmatpush1.msra.mxu0 0.0
        %2039 = vmatprep.subr.mxu0 0.0
        %2040 = vmatpush1.msra.mxu0 0.0
        %2041 = vmatprep.subr.mxu0 0.0
        %2042 = vmatpush1.msra.mxu0 0.0
        %2043 = vmatprep.subr.mxu0 0.0
        %2044 = vmatpush1.msra.mxu0 0.0
        %2045 = vmatprep.subr.mxu0 0.0
        %2046 = vmatpush1.msra.mxu0 0.0
        %2047 = vmatprep.subr.mxu0 0.0
        %2048 = vmatpush1.msra.mxu0 0.0
        %2049 = vmatprep.subr.mxu0 0.0
        %2050 = vmatpush1.msra.mxu0 0.0
        %2051 = vmatprep.subr.mxu0 0.0
        %2052 = vmatpush1.msra.mxu0 0.0
        %2053 = vmatprep.subr.mxu0 0.0
        %2054 = vmatpush1.msra.mxu0 0.0
        %2055 = vmatprep.subr.mxu0 0.0
        %2056 = vmatpush1.msra.mxu0 0.0
        %2057 = vmatprep.subr.mxu0 0.0
        %2058 = vmatpush1.msra.mxu0 0.0
        %2059 = vmatprep.subr.mxu0 0.0
        %2060 = vmatpush1.msra.mxu0 0.0
        %2061 = vmatprep.mubr.f32.mxu0 0.0
        %2062 = vmatmul.mubr.f32.gmra.mrb[0].mxu0 %v1995
        %v2063 = vpop.f32.mrb[0].mxu0
        %v2064 = vadd.f32 %v1991, %v2063
        %v2065 = vpop.f32.mrb[0].mxu0
        %2066 = vdwg.mxu0
        %2067 = vst [vmem:[%s377] sm:$0xff] %v2064
        %s2068 = sand.u32 %s269, 1
        %s2069 = scalar_lea.sflag [#allocation3], %s2068
        %s2070 = sand.u32 %s269, 1
        %s2071 = smul.addr %s2070, 8
        %s2072 = scalar_lea.vmem [#allocation2], %s2071
        // Predicated region
        $region65: #{axial_attention_forward.1} parent=63 // pred_check
          %p2073 = pneg %p279
        $region66: #{axial_attention_forward.1} parent=63 // pred_check_branch
          %2075 = sbr.rel (%p2073) target = $region68
        $region67: #{axial_attention_forward.1} parent=63 // pred_region
          %s2077 = ssub.s32 128, 128
          %2078 = vsyncadd %s2069, %s2077
          %s2079 = smul.addr %s25, 128
          %s2080 = scalar_lea.hbm %s11, %s2079
          %s2082 = sshll.u32 %s2072, 4
          %s2083 = int_to_ptr.vmem [resolvable:$true] %s2082
          %2085 = dma.vmem_to_hbm [thread:$0]  %s2083, 128, %s2080, %s2069
        $region68: #{axial_attention_forward.1} parent=63 // pred_fallthru
          _
      $region64: #{axial_attention_forward.1} parent=5 // pred_fallthru
        _
      %p2086 = scmp.le.s32.totalorder 2, %s20
      // Predicated region
      $region69: #{axial_attention_forward.1} parent=5 // pred_check
        %p2087 = pneg %p2086
      $region70: #{axial_attention_forward.1} parent=5 // pred_check_branch
        %2089 = sbr.rel (%p2087) target = $region72
      $region71: #{axial_attention_forward.1} parent=5 // pred_region
        %s2090 = ssub.s32 %s20, 2
        // Predicated region
        $region73: #{axial_attention_forward.1} parent=71 // pred_check
          %p2091 = pneg %p285
        $region74: #{axial_attention_forward.1} parent=71 // pred_check_branch
          %2093 = sbr.rel (%p2091) target = $region76
        $region75: #{axial_attention_forward.1} parent=71 // pred_region
          %s2094 = sand.u32 %s270, 1
          %s2095 = scalar_lea.sflag [#allocation3], %s2094
          %s2096 = sand.u32 %s270, 1
          %s2097 = smul.addr %s2096, 8
          %s2098 = scalar_lea.vmem [#allocation2], %s2097
          %2099 = dma.done %s2095, 128
        $region76: #{axial_attention_forward.1} parent=71 // pred_fallthru
          _
      $region72: #{axial_attention_forward.1} parent=5 // pred_fallthru
        _
    $region6: #{axial_attention_forward.1} parent=1 // loop_footer
      %s24 = sadd.s32 1, %s20
    $region7: #{axial_attention_forward.1} parent=1 // loop_footer_branch
      %19 = sbr.rel target = $region3
    $region8: #{axial_attention_forward.1} parent=1 // loop_exit
      _
    %2100 = vsyncpa [#allocation3], 1
    %s2101 = scalar_lea.sflag [#allocation3], 1
    %2102 = vsyncpa %s2101, 1

</llo_original>
